<compile_context>
chip_gen: v6e
topology: v6e:2x2x1
jax: 0.10.0
libtpu: 0.0.40
codegen_flags: <defaults>
</compile_context>

<pallas_src>
import functools
import math

import jax
import jax.numpy as jnp
from jax.experimental import pallas as pl
from jax.experimental.pallas import tpu as pltpu


def _round_up(x, m):
    return (x + m - 1) // m * m


def _tiles_for(n_nodes, tm, tk):
    """Clamp tiles to the graph and derive decoupled row / K paddings."""
    tm = min(tm, _round_up(n_nodes, 8))
    # Keep >= 2 row blocks when the graph allows it so both v7x TensorCores pull
    # adjacency from HBM concurrently (row axis is marked "parallel").
    if n_nodes >= 256:
        tm = min(tm, max(128, _round_up((n_nodes + 1) // 2, 8)))
    tk = min(tk, _round_up(n_nodes, 128))      # lane-dense adj tiles
    n_pad_m = _round_up(n_nodes, tm)
    n_pad_k = _round_up(n_nodes, tk)
    return tm, tk, n_pad_m, n_pad_k


def _pad2d(a, rows, cols, dtype):
    a = a.astype(dtype)
    pr, pc = rows - a.shape[0], cols - a.shape[1]
    if pr or pc:
        a = jnp.pad(a, ((0, pr), (0, pc)))
    return a


def prepare_adjacency(adj, *, tm=512, tk=512, compute_dtype=jnp.bfloat16):
    """Pad + cast the (shared) adjacency ONCE per graph.

    The result can be passed to `graph_convolution` for every GCNII layer,
    avoiding a per-call pass over the N^2 matrix. Must use the same tm/tk as
    the subsequent `graph_convolution` calls.
    """
    n = adj.shape[0]
    assert adj.shape == (n, n)
    tm, tk, n_pad_m, n_pad_k = _tiles_for(n, tm, tk)
    return _pad2d(adj, n_pad_m, n_pad_k, compute_dtype)


def _gcn_kernel(adj_ref, x_ref, h0_ref, w_ref, out_ref, acc_ref, *,
                alpha, theta, tk, x_resident):
    """Grid = (row tiles, K tiles).  Accumulate hi = adj @ x over K, then finalize."""
    k = pl.program_id(1)

    @pl.when(k == 0)
    def _init():
        acc_ref[...] = jnp.zeros_like(acc_ref)

    if x_resident:
        # x is VMEM-resident (constant block index -> single DMA); slice the K chunk.
        start = pl.multiple_of(k * tk, tk)
        x_blk = x_ref[pl.ds(start, tk), :]
    else:
        x_blk = x_ref[...]

    # Partial hi += adj_tile @ x_chunk  (bf16 operands, f32 MXU accumulation).
    acc_ref[...] += jnp.dot(adj_ref[...], x_blk, preferred_element_type=jnp.float32)

    @pl.when(k == pl.num_programs(1) - 1)
    def _finalize():
        # support = (1 - alpha) * hi + alpha * h0        (f32)
        support = (1.0 - alpha) * acc_ref[...] + alpha * h0_ref[...]
        # output = theta * (support @ W) + (1 - theta) * support   (full-f32 epilogue)
        out = theta * jnp.dot(support, w_ref[...],
                              preferred_element_type=jnp.float32) \
            + (1.0 - theta) * support
        out_ref[...] = out.astype(out_ref.dtype)


def graph_convolution(adj, x, h0, weight, *, lamda, alpha, l,
                      tm=512, tk=512, compute_dtype=jnp.bfloat16):
    """Pallas-backed GCNII GraphConvolution forward (variant=False, residual=False).

    `adj` may be either the raw (N, N) matrix or the output of `prepare_adjacency`
    (preferred — prepared once per graph, shared across layers).
    """
    n, f = x.shape
    assert h0.shape == (n, f)
    assert weight.shape == (f, f)

    theta = float(math.log(lamda / l + 1.0))
    alpha = float(alpha)

    tm, tk, n_pad_m, n_pad_k = _tiles_for(n, tm, tk)
    f_pad = _round_up(f, 128)
    cd = jnp.dtype(compute_dtype).itemsize

    # Adjacency: reuse a pre-padded / pre-cast matrix if given, else pad+cast here.
    if adj.shape == (n_pad_m, n_pad_k) and adj.dtype == jnp.dtype(compute_dtype):
        adj_p = adj
    else:
        assert adj.shape == (n, n)
        adj_p = _pad2d(adj, n_pad_m, n_pad_k, compute_dtype)

    x_p = _pad2d(x, n_pad_k, f_pad, compute_dtype)
    h0_p = _pad2d(h0, n_pad_m, f_pad, jnp.float32)
    # Weight stays f32: F^2*4 bytes of DMA is negligible and keeps the epilogue at
    # full precision (the kernel is adj-HBM-bound, the extra cost is hidden slack).
    w_p = _pad2d(weight, f_pad, f_pad, jnp.float32)

    # x fully VMEM-resident whenever small enough (DMA'd once; sliced in-kernel),
    # otherwise stream one (tk, F) K-slab per step.
    x_resident = n_pad_k * f_pad * cd <= 4 * 1024 * 1024

    if x_resident:
        x_spec = pl.BlockSpec((n_pad_k, f_pad), lambda i, k: (0, 0))
    else:
        x_spec = pl.BlockSpec((tk, f_pad), lambda i, k: (k, 0))

    grid = (n_pad_m // tm, n_pad_k // tk)

    # Rough VMEM estimate (double-buffered inputs/outputs + accumulator scratch).
    x_vmem = (2 * n_pad_k * f_pad * cd) if x_resident else (2 * tk * f_pad * cd)
    vmem_est = (2 * tm * tk * cd          # adj tile
                + x_vmem                  # x
                + 2 * tm * f_pad * 4      # h0
                + 2 * f_pad * f_pad * 4   # weight
                + 2 * tm * f_pad * 4      # out
                + tm * f_pad * 4)         # f32 accumulator
    vmem_limit = int(min(max(2 * vmem_est, 16 * 1024 * 1024), 64 * 1024 * 1024))

    flops = 2 * n_pad_m * n_pad_k * f_pad + 2 * n_pad_m * f_pad * f_pad
    bytes_accessed = (adj_p.size * cd + x_p.size * cd + h0_p.size * 4
                      + w_p.size * 4 + n_pad_m * f_pad * 4)

    out_p = pl.pallas_call(
        functools.partial(_gcn_kernel, alpha=alpha, theta=theta, tk=tk,
                          x_resident=x_resident),
        out_shape=jax.ShapeDtypeStruct((n_pad_m, f_pad), jnp.float32),
        grid_spec=pltpu.PrefetchScalarGridSpec(
            num_scalar_prefetch=0,
            grid=grid,
            in_specs=[
                pl.BlockSpec((tm, tk), lambda i, k: (i, k)),        # adj tile
                x_spec,                                             # x (resident or slab)
                pl.BlockSpec((tm, f_pad), lambda i, k: (i, 0)),     # h0 row tile
                pl.BlockSpec((f_pad, f_pad), lambda i, k: (0, 0)),  # weight (f32)
            ],
            out_specs=pl.BlockSpec((tm, f_pad), lambda i, k: (i, 0)),
            scratch_shapes=[pltpu.VMEM((tm, f_pad), jnp.float32)],  # hi accumulator
        ),
        compiler_params=pltpu.CompilerParams(
            dimension_semantics=("parallel", "arbitrary"),
            vmem_limit_bytes=vmem_limit,
        ),
        cost_estimate=pl.CostEstimate(flops=flops, transcendentals=0,
                                      bytes_accessed=bytes_accessed),
    )(adj_p, x_p, h0_p, w_p)

    return out_p[:n, :f].astype(x.dtype)


def graph_convolution_ref(adj, x, h0, weight, *, lamda, alpha, l):
    """Pure-JAX f32 reference matching the PyTorch module semantics."""
    theta = math.log(lamda / l + 1.0)
    hi = adj @ x
    support = (1.0 - alpha) * hi + alpha * h0
    return theta * (support @ weight) + (1.0 - theta) * support


if __name__ == "__main__":
    # Small GCNII-like sizes: 512 nodes, hidden dim 128 (lane-dense F, 2 row blocks).
    N, F = 512, 128

    key = jax.random.PRNGKey(0)
    k_adj, k_x, k_h0, k_w = jax.random.split(key, 4)

    # Dense, normalized-ish "adjacency" (spmm implemented as a dense matmul).
    adj = jax.random.uniform(k_adj, (N, N), dtype=jnp.float32) / N
    x = jax.random.normal(k_x, (N, F), dtype=jnp.float32)
    h0 = jax.random.normal(k_h0, (N, F), dtype=jnp.float32)

    # Parameter init mirroring reset_parameters(): W ~ U(-stdv, stdv), stdv = 1/sqrt(F).
    stdv = 1.0 / math.sqrt(F)
    weight = jax.random.uniform(k_w, (F, F), dtype=jnp.float32,
                                minval=-stdv, maxval=stdv)

    lamda, alpha = 0.5, 0.1

    # Prepare (pad + bf16-cast) the shared adjacency ONCE, reuse it for every layer.
    adj_prep = jax.block_until_ready(prepare_adjacency(adj))

    # Two "layers" (l = 1, 2) sharing the prepared adjacency.
    for l in (1, 2):
        out = graph_convolution(adj_prep, x, h0, weight,
                                lamda=lamda, alpha=alpha, l=l)
        out = jax.block_until_ready(out)

        ref = graph_convolution_ref(adj, x, h0, weight,
                                    lamda=lamda, alpha=alpha, l=l)
        assert out.shape == (N, F)
        # bf16 adj/x streaming (f32 accumulation, f32 epilogue) vs pure-f32 reference.
        assert jnp.allclose(out, ref, atol=1e-2, rtol=2e-2), f"mismatch at l={l}"

    # TODO(synk): variant=True (concat [hi, h0] -> 2F-wide support) and residual=True
    # (output + input) paths are not implemented; module defaults are covered.
    print("KERNEL_OK")
</pallas_src>

<mosaic_0001>
module attributes {stable_mosaic.version = 11 : i64} {
  func.func @_gcn_kernel(%arg0: i32, %arg1: i32, %arg2: memref<256x512xbf16, #tpu.memory_space<vmem>>, %arg3: memref<512x128xbf16, #tpu.memory_space<vmem>>, %arg4: memref<256x128xf32, #tpu.memory_space<vmem>>, %arg5: memref<128x128xf32, #tpu.memory_space<vmem>>, %arg6: memref<256x128xf32, #tpu.memory_space<vmem>>, %arg7: memref<256x128xf32, #tpu.memory_space<vmem>>) attributes {dimension_semantics = [#tpu.dimension_semantics<parallel>, #tpu.dimension_semantics<arbitrary>], iteration_bounds = array<i64: 2, 1>, scalar_prefetch = 0 : i64, scratch_operands = 1 : i64, tpu.core_type = #tpu.core_type<tc>, window_params = [{transform_indices = @transform_0, window_bounds = array<i64: 256, 512>}, {pipeline_mode = #tpu.pipeline_mode<synchronous>, transform_indices = @transform_1, window_bounds = array<i64: 512, 128>}, {transform_indices = @transform_2, window_bounds = array<i64: 256, 128>}, {pipeline_mode = #tpu.pipeline_mode<synchronous>, transform_indices = @transform_3, window_bounds = array<i64: 128, 128>}, {transform_indices = @transform_4, window_bounds = array<i64: 256, 128>}]} {
    %c0_i32 = arith.constant 0 : i32
    %0 = arith.cmpi eq, %arg1, %c0_i32 : i32
    %1 = arith.extui %0 : i1 to i32
    %c0_i32_0 = arith.constant 0 : i32
    %2 = arith.cmpi ne, %1, %c0_i32_0 : i32
    scf.if %2 {
      %cst_9 = arith.constant 0.000000e+00 : f32
      %15 = vector.broadcast %cst_9 : f32 to vector<256x128xf32>
      %c0_10 = arith.constant 0 : index
      %c0_11 = arith.constant 0 : index
      %16 = vector.load %arg7[%c0_10, %c0_11] : memref<256x128xf32, #tpu.memory_space<vmem>>, vector<256x128xf32>
      tpu.vector_store %arg7[%c0_10, %c0_11], %15 {strides = array<i32>} : memref<256x128xf32, #tpu.memory_space<vmem>>, vector<256x128xf32>,
    } else {
    }
    %c512_i32 = arith.constant 512 : i32
    %3 = arith.muli %arg1, %c512_i32 : i32
    %4 = tpu.assume_multiple %3, 512 : i32
    %5 = arith.index_cast %4 : i32 to index
    %c0 = arith.constant 0 : index
    %6 = vector.load %arg3[%5, %c0] : memref<512x128xbf16, #tpu.memory_space<vmem>>, vector<512x128xbf16>
    %c0_1 = arith.constant 0 : index
    %c0_2 = arith.constant 0 : index
    %7 = vector.load %arg7[%c0_1, %c0_2] : memref<256x128xf32, #tpu.memory_space<vmem>>, vector<256x128xf32>
    %c0_3 = arith.constant 0 : index
    %c0_4 = arith.constant 0 : index
    %8 = vector.load %arg2[%c0_3, %c0_4] : memref<256x512xbf16, #tpu.memory_space<vmem>>, vector<256x512xbf16>
    %cst = arith.constant dense<0.000000e+00> : vector<256x128xf32>
    %9 = tpu.matmul %8, %6, %cst {dimension_numbers = #tpu.dot_dimension_numbers<[1], [0], [0], [1], [0, 0, 1, 1], [], []>} : vector<256x512xbf16>, vector<512x128xbf16>, vector<256x128xf32> -> vector<256x128xf32>
    %10 = arith.addf %7, %9 : vector<256x128xf32>
    %c0_5 = arith.constant 0 : index
    %c0_6 = arith.constant 0 : index
    %11 = vector.load %arg7[%c0_5, %c0_6] : memref<256x128xf32, #tpu.memory_space<vmem>>, vector<256x128xf32>
    tpu.vector_store %arg7[%c0_5, %c0_6], %10 {strides = array<i32>} : memref<256x128xf32, #tpu.memory_space<vmem>>, vector<256x128xf32>,
    %c0_i32_7 = arith.constant 0 : i32
    %12 = arith.cmpi eq, %arg1, %c0_i32_7 : i32
    %13 = arith.extui %12 : i1 to i32
    %c0_i32_8 = arith.constant 0 : i32
    %14 = arith.cmpi ne, %13, %c0_i32_8 : i32
    scf.if %14 {
      %c0_9 = arith.constant 0 : index
      %c0_10 = arith.constant 0 : index
      %15 = vector.load %arg7[%c0_9, %c0_10] : memref<256x128xf32, #tpu.memory_space<vmem>>, vector<256x128xf32>
      %cst_11 = arith.constant 0.899999976 : f32
      %16 = vector.broadcast %cst_11 : f32 to vector<256x128xf32>
      %17 = arith.mulf %16, %15 : vector<256x128xf32>
      %c0_12 = arith.constant 0 : index
      %c0_13 = arith.constant 0 : index
      %18 = vector.load %arg4[%c0_12, %c0_13] : memref<256x128xf32, #tpu.memory_space<vmem>>, vector<256x128xf32>
      %cst_14 = arith.constant 1.000000e-01 : f32
      %19 = vector.broadcast %cst_14 : f32 to vector<256x128xf32>
      %20 = arith.mulf %19, %18 : vector<256x128xf32>
      %21 = arith.addf %17, %20 : vector<256x128xf32>
      %c0_15 = arith.constant 0 : index
      %c0_16 = arith.constant 0 : index
      %22 = vector.load %arg5[%c0_15, %c0_16] : memref<128x128xf32, #tpu.memory_space<vmem>>, vector<128x128xf32>
      %cst_17 = arith.constant dense<0.000000e+00> : vector<256x128xf32>
      %23 = tpu.matmul %21, %22, %cst_17 {dimension_numbers = #tpu.dot_dimension_numbers<[1], [0], [0], [1], [0, 0, 1, 1], [], []>} : vector<256x128xf32>, vector<128x128xf32>, vector<256x128xf32> -> vector<256x128xf32>
      %cst_18 = arith.constant 0.405465096 : f32
      %24 = vector.broadcast %cst_18 : f32 to vector<256x128xf32>
      %25 = arith.mulf %24, %23 : vector<256x128xf32>
      %cst_19 = arith.constant 0.594534874 : f32
      %26 = vector.broadcast %cst_19 : f32 to vector<256x128xf32>
      %27 = arith.mulf %26, %21 : vector<256x128xf32>
      %28 = arith.addf %25, %27 : vector<256x128xf32>
      %c0_20 = arith.constant 0 : index
      %c0_21 = arith.constant 0 : index
      %29 = vector.load %arg6[%c0_20, %c0_21] : memref<256x128xf32, #tpu.memory_space<vmem>>, vector<256x128xf32>
      tpu.vector_store %arg6[%c0_20, %c0_21], %28 {strides = array<i32>} : memref<256x128xf32, #tpu.memory_space<vmem>>, vector<256x128xf32>,
    } else {
    }
    return
  }
  func.func @transform_0(%arg0: i32, %arg1: i32) -> (i32, i32) {
    %c0_i32 = arith.constant 0 : i32
    return %arg0, %arg1 : i32, i32
  }
  func.func @transform_1(%arg0: i32, %arg1: i32) -> (i32, i32) {
    %c0_i32 = arith.constant 0 : i32
    %c0_i32_0 = arith.constant 0 : i32
    %c0_i32_1 = arith.constant 0 : i32
    return %c0_i32, %c0_i32_0 : i32, i32
  }
  func.func @transform_2(%arg0: i32, %arg1: i32) -> (i32, i32) {
    %c0_i32 = arith.constant 0 : i32
    %c0_i32_0 = arith.constant 0 : i32
    return %arg0, %c0_i32 : i32, i32
  }
  func.func @transform_3(%arg0: i32, %arg1: i32) -> (i32, i32) {
    %c0_i32 = arith.constant 0 : i32
    %c0_i32_0 = arith.constant 0 : i32
    %c0_i32_1 = arith.constant 0 : i32
    return %c0_i32, %c0_i32_0 : i32, i32
  }
  func.func @transform_4(%arg0: i32, %arg1: i32) -> (i32, i32) {
    %c0_i32 = arith.constant 0 : i32
    %c0_i32_0 = arith.constant 0 : i32
    return %arg0, %c0_i32 : i32, i32
  }
}

</mosaic_0001>

<llo_original>
// kernel: tpu_custom_call.1
$region0: #{tpu_custom_call.1}
  #allocation0 [shape = 'u32[]', space=smem, size = 0x4, offset = 0x4, fixed_abs, tag = 'smem constant byte address 0x4 - core index']
  #allocation1 [shape = 'u32[144,128]{1,0:T(1,128)}', space=vmem, size = 0x12000, scoped, tag = 'internal scratch']
  #allocation2 [shape = 'f32[256,128]{1,0:T(8,128)}', space=vmem, size = 0x20000, scoped, tag = 'scratch operand']
  %s0 = inlined_call_operand.hbm [shape: bf16[512,512], index: 0, kind: input, shape index: {}]
  %s1 = inlined_call_operand.hbm [shape: bf16[512,128], index: 1, kind: input, shape index: {}]
  %s2 = inlined_call_operand.hbm [shape: f32[512,128], index: 2, kind: input, shape index: {}]
  %s3 = inlined_call_operand.hbm [shape: f32[128,128], index: 3, kind: input, shape index: {}]
  %s4 = inlined_call_operand.hbm [shape: f32[512,128], index: 4, kind: output, shape index: {}]
  %s5 = sld [smem:[#allocation0]]
  $region73: #{tpu_custom_call.1} parent=0
    _
  %s7 = ssub.s32 1, %s5
  %s8 = scalar_select 0, %s7, %s5
  $region1: #{tpu_custom_call.1} parent=0
    #allocation3 [shape = 'u8[524288]{0}', space=vmem, size = 0x80000, scoped, tag = 'input window, operand 0']
    #allocation4 [shape = 's32[2]{0}', space=sflag, size = 0x8, scoped, tag = 'scoped memory for tpu_custom_call.1']
    #allocation5 [shape = 's32[2]{0}', space=sflag, size = 0x8, scoped, tag = 'scoped memory for tpu_custom_call.1']
    #allocation6 [shape = 'u8[131072]{0}', space=vmem, size = 0x20000, scoped, tag = 'input window, operand 1, single buffered']
    #allocation7 [shape = 's32[1]{0}', space=sflag, size = 0x4, scoped, tag = 'scoped memory for tpu_custom_call.1']
    #allocation8 [shape = 'u8[262144]{0}', space=vmem, size = 0x40000, scoped, tag = 'input window, operand 2']
    #allocation9 [shape = 'u8[65536]{0}', space=vmem, size = 0x10000, scoped, tag = 'input window, operand 3, single buffered']
    #allocation10 [shape = 'u8[262144]{0}', space=vmem, size = 0x40000, scoped, tag = 'output window, operand 0']
    %9 = vsyncpa [#allocation4], 0
    %s10 = scalar_lea.sflag [#allocation4], 1
    %11 = vsyncpa %s10, 0
    %12 = vsyncpa [#allocation7], 0
    %13 = vsyncpa [#allocation5], 0
    %s14 = scalar_lea.sflag [#allocation5], 1
    %15 = vsyncpa %s14, 0
    loop: start=0, step=1, limit=4
    $region2: #{tpu_custom_call.1} parent=1 // loop_pre_header
      _
    $region3: #{tpu_custom_call.1} parent=1 // loop_header
      %s17 = sphi 0, %s21
      %p18 = scmp.ge.s32.totalorder %s17, 4
      %s24 = sphi 0, %s36
      %s25 = sphi 0, %s32
      %s26 = sphi 0, %s24
      %s27 = sphi 0, %s25
      %s28 = sphi 0, %s26
      %s29 = sphi 0, %s27
      %s41 = sphi 0, %s43
      %s44 = sphi 0, %s41
      %s45 = sphi 0, %s44
      %s61 = sphi 0, %s45
      %s65 = sphi 0, %s65
      %s67 = sphi 0, %s65
      %s68 = sphi 0, %s67
      %s82 = sphi 0, %s68
      %s88 = sphi 0, %s90
      %s91 = sphi 0, %s88
      %s92 = sphi 0, %s91
      %s108 = sphi 0, %s92
      %s112 = sphi 0, %s112
      %s114 = sphi 0, %s112
      %s115 = sphi 0, %s114
      %s129 = sphi 0, %s115
      %s135 = sphi 0, %s137
      %s138 = sphi 0, %s135
      %s139 = sphi 0, %s138
      %s155 = sphi 0, %s139
    $region4: #{tpu_custom_call.1} parent=1 // loop_header_branch
      %20 = sbr.rel (%p18) target = $region8
    $region5: #{tpu_custom_call.1} parent=1 // loop_body
      %s22 = ssub.s32 %s17, 1
      %s23 = ssub.s32 %s17, 2
      %s30 = sadd.s32 1, %s25
      %p31 = scmp.ge.s32.totalorder %s30, 1
      %s32 = scalar_select %p31, 0, %s30
      %s33 = sadd.s32 1, %s24
      %s34 = scalar_select %p31, %s33, %s24
      %p35 = scmp.ge.s32.totalorder %s34, 2
      %s36 = scalar_select %p35, 0, %s34
      %s37 = ssub.s32 %s24, %s36
      %s38 = ssub.s32 %s25, %s32
      %s39 = sor.u32 %s37, %s38
      %p40 = scmp.eq.s32.totalorder %s39, 0
      %s42 = sadd.s32 %s41, 1
      %s43 = scalar_select %p40, %s41, %s42
      %p46 = pneg %p40
      %p47 = scmp.eq.s32.totalorder %s17, 1
      %p48 = por %p46, %p47
      %p49 = scmp.ne.s32.totalorder %s41, %s44
      %p50 = scmp.eq.s32.totalorder %s17, 0
      %p51 = por %p49, %p50
      %p52 = scmp.ne.s32.totalorder %s41, %s44
      %p53 = scmp.eq.s32.totalorder %s22, 1
      %p54 = por %p52, %p53
      %p55 = scmp.ne.s32.totalorder %s44, %s45
      %p56 = scmp.eq.s32.totalorder %s22, 0
      %p57 = por %p55, %p56
      %p58 = scmp.ne.s32.totalorder %s44, %s45
      %p59 = scmp.eq.s32.totalorder %s23, 1
      %p60 = por %p58, %p59
      %p62 = scmp.ne.s32.totalorder %s45, %s61
      %p63 = scmp.eq.s32.totalorder %s23, 0
      %p64 = por %p62, %p63
      %s66 = sadd.s32 %s65, 1
      %p69 = scmp.eq.s32.totalorder %s17, 1
      %p70 = scmp.ne.s32.totalorder %s65, %s67
      %p71 = scmp.eq.s32.totalorder %s17, 0
      %p72 = por %p70, %p71
      %p73 = scmp.ne.s32.totalorder %s65, %s67
      %p74 = scmp.eq.s32.totalorder %s22, 1
      %p75 = por %p73, %p74
      %p76 = scmp.ne.s32.totalorder %s67, %s68
      %p77 = scmp.eq.s32.totalorder %s22, 0
      %p78 = por %p76, %p77
      %p79 = scmp.ne.s32.totalorder %s67, %s68
      %p80 = scmp.eq.s32.totalorder %s23, 1
      %p81 = por %p79, %p80
      %p83 = scmp.ne.s32.totalorder %s68, %s82
      %p84 = scmp.eq.s32.totalorder %s23, 0
      %p85 = por %p83, %p84
      %s86 = ssub.s32 %s24, %s36
      %p87 = scmp.eq.s32.totalorder %s86, 0
      %s89 = sadd.s32 %s88, 1
      %s90 = scalar_select %p87, %s88, %s89
      %p93 = pneg %p87
      %p94 = scmp.eq.s32.totalorder %s17, 1
      %p95 = por %p93, %p94
      %p96 = scmp.ne.s32.totalorder %s88, %s91
      %p97 = scmp.eq.s32.totalorder %s17, 0
      %p98 = por %p96, %p97
      %p99 = scmp.ne.s32.totalorder %s88, %s91
      %p100 = scmp.eq.s32.totalorder %s22, 1
      %p101 = por %p99, %p100
      %p102 = scmp.ne.s32.totalorder %s91, %s92
      %p103 = scmp.eq.s32.totalorder %s22, 0
      %p104 = por %p102, %p103
      %p105 = scmp.ne.s32.totalorder %s91, %s92
      %p106 = scmp.eq.s32.totalorder %s23, 1
      %p107 = por %p105, %p106
      %p109 = scmp.ne.s32.totalorder %s92, %s108
      %p110 = scmp.eq.s32.totalorder %s23, 0
      %p111 = por %p109, %p110
      %s113 = sadd.s32 %s112, 1
      %p116 = scmp.eq.s32.totalorder %s17, 1
      %p117 = scmp.ne.s32.totalorder %s112, %s114
      %p118 = scmp.eq.s32.totalorder %s17, 0
      %p119 = por %p117, %p118
      %p120 = scmp.ne.s32.totalorder %s112, %s114
      %p121 = scmp.eq.s32.totalorder %s22, 1
      %p122 = por %p120, %p121
      %p123 = scmp.ne.s32.totalorder %s114, %s115
      %p124 = scmp.eq.s32.totalorder %s22, 0
      %p125 = por %p123, %p124
      %p126 = scmp.ne.s32.totalorder %s114, %s115
      %p127 = scmp.eq.s32.totalorder %s23, 1
      %p128 = por %p126, %p127
      %p130 = scmp.ne.s32.totalorder %s115, %s129
      %p131 = scmp.eq.s32.totalorder %s23, 0
      %p132 = por %p130, %p131
      %s133 = ssub.s32 %s24, %s36
      %p134 = scmp.eq.s32.totalorder %s133, 0
      %s136 = sadd.s32 %s135, 1
      %s137 = scalar_select %p134, %s135, %s136
      %p140 = pneg %p134
      %p141 = scmp.eq.s32.totalorder %s17, 1
      %p142 = por %p140, %p141
      %p143 = scmp.ne.s32.totalorder %s135, %s138
      %p144 = scmp.eq.s32.totalorder %s17, 0
      %p145 = por %p143, %p144
      %p146 = scmp.ne.s32.totalorder %s135, %s138
      %p147 = scmp.eq.s32.totalorder %s22, 1
      %p148 = por %p146, %p147
      %p149 = scmp.ne.s32.totalorder %s138, %s139
      %p150 = scmp.eq.s32.totalorder %s22, 0
      %p151 = por %p149, %p150
      %p152 = scmp.ne.s32.totalorder %s138, %s139
      %p153 = scmp.eq.s32.totalorder %s23, 1
      %p154 = por %p152, %p153
      %p156 = scmp.ne.s32.totalorder %s139, %s155
      %p157 = scmp.eq.s32.totalorder %s23, 0
      %p158 = por %p156, %p157
      %p159 = scmp.le.s32.totalorder 1, %s17
      %p160 = scmp.lt.s32.totalorder %s17, 3
      %p161 = pnand %p159, %p160
      %p162 = pneg %p161
      // Predicated region
      $region9: #{tpu_custom_call.1} parent=5 // pred_check
        _
      $region10: #{tpu_custom_call.1} parent=5 // pred_check_branch
        %164 = sbr.rel (%p161) target = $region12
      $region11: #{tpu_custom_call.1} parent=5 // pred_region
        %s165 = ssub.s32 %s17, 1
        // Predicated region
        $region13: #{tpu_custom_call.1} parent=11 // pred_check
          %p166 = pneg %p78
        $region14: #{tpu_custom_call.1} parent=11 // pred_check_branch
          %168 = sbr.rel (%p166) target = $region16
        $region15: #{tpu_custom_call.1} parent=11 // pred_region
          %s170 = ssub.s32 4096, 4096
          %171 = vsyncadd [#allocation7], %s170
          %s172 = sshll.u32 [#allocation6], 4
          %s173 = int_to_ptr.vmem [resolvable:$true] %s172
          %178 = dma.hbm_to_vmem [thread:$0]  %s1, 4096, %s173, [#allocation7], 64, 64, 4
        $region16: #{tpu_custom_call.1} parent=11 // pred_fallthru
          _
        // Predicated region
        $region17: #{tpu_custom_call.1} parent=11 // pred_check
          %p179 = pneg %p125
        $region18: #{tpu_custom_call.1} parent=11 // pred_check_branch
          %181 = sbr.rel (%p179) target = $region20
        $region19: #{tpu_custom_call.1} parent=11 // pred_region
          %s183 = ssub.s32 2048, 2048
          %184 = vsyncadd [#allocation7], %s183
          %s185 = sshll.u32 [#allocation9], 4
          %s186 = int_to_ptr.vmem [resolvable:$true] %s185
          %191 = dma.hbm_to_vmem [thread:$0]  %s3, 2048, %s186, [#allocation7], 128, 128, 8
        $region20: #{tpu_custom_call.1} parent=11 // pred_fallthru
          _
      $region12: #{tpu_custom_call.1} parent=5 // pred_fallthru
        _
      %p192 = scmp.lt.s32.totalorder %s17, 2
      // Predicated region
      $region21: #{tpu_custom_call.1} parent=5 // pred_check
        %p193 = pneg %p192
      $region22: #{tpu_custom_call.1} parent=5 // pred_check_branch
        %195 = sbr.rel (%p193) target = $region24
      $region23: #{tpu_custom_call.1} parent=5 // pred_region
        // Predicated region
        $region25: #{tpu_custom_call.1} parent=23 // pred_check
          %p196 = pneg %p51
        $region26: #{tpu_custom_call.1} parent=23 // pred_check_branch
          %198 = sbr.rel (%p196) target = $region28
        $region27: #{tpu_custom_call.1} parent=23 // pred_region
          %s199 = sand.u32 %s17, 1
          %s200 = scalar_lea.sflag [#allocation4], %s199
          %s201 = sand.u32 %s41, 1
          %s202 = smul.addr %s201, 512
          %s203 = scalar_lea.vmem [#allocation3], %s202
          %s204 = smul.u32 32, %s24
          %s205 = smul.u32 4, %s25
          %s207 = ssub.s32 8192, 8192
          %208 = vsyncadd %s200, %s207
          %s209 = smul.addr %s204, 4
          %s210 = sadd.s32 %s205, %s209
          %s211 = smul.addr %s210, 64
          %s212 = scalar_lea.hbm %s0, %s211
          %s213 = sshll.u32 %s203, 4
          %s214 = int_to_ptr.vmem [resolvable:$true] %s213
          %219 = dma.hbm_to_vmem [thread:$0]  %s212, 8192, %s214, %s200, 256, 256, 16
        $region28: #{tpu_custom_call.1} parent=23 // pred_fallthru
          _
        // Predicated region
        $region29: #{tpu_custom_call.1} parent=23 // pred_check
          %p220 = pneg %p98
        $region30: #{tpu_custom_call.1} parent=23 // pred_check_branch
          %222 = sbr.rel (%p220) target = $region32
        $region31: #{tpu_custom_call.1} parent=23 // pred_region
          %s223 = sand.u32 %s17, 1
          %s224 = scalar_lea.sflag [#allocation4], %s223
          %s225 = sand.u32 %s88, 1
          %s226 = smul.addr %s225, 256
          %s227 = scalar_lea.vmem [#allocation8], %s226
          %s228 = smul.u32 32, %s24
          %s230 = ssub.s32 4096, 4096
          %231 = vsyncadd %s224, %s230
          %s232 = smul.addr %s228, 128
          %s233 = scalar_lea.hbm %s2, %s232
          %s234 = sshll.u32 %s227, 4
          %s235 = int_to_ptr.vmem [resolvable:$true] %s234
          %240 = dma.hbm_to_vmem [thread:$0]  %s233, 4096, %s235, %s224, 128, 128, 8
        $region32: #{tpu_custom_call.1} parent=23 // pred_fallthru
          _
      $region24: #{tpu_custom_call.1} parent=5 // pred_fallthru
        _
      %p241 = scmp.le.s32.totalorder 1, %s17
      %p242 = scmp.lt.s32.totalorder %s17, 3
      %p243 = pnand %p241, %p242
      %p244 = pneg %p243
      // Predicated region
      $region33: #{tpu_custom_call.1} parent=5 // pred_check
        _
      $region34: #{tpu_custom_call.1} parent=5 // pred_check_branch
        %246 = sbr.rel (%p243) target = $region36
      $region35: #{tpu_custom_call.1} parent=5 // pred_region
        %s247 = ssub.s32 %s17, 1
        %s248 = sand.u32 %s22, 1
        %s249 = scalar_lea.sflag [#allocation4], %s248
        %s250 = sand.u32 %s44, 1
        %s251 = smul.addr %s250, 512
        %s252 = scalar_lea.vmem [#allocation3], %s251
        // Predicated region
        $region37: #{tpu_custom_call.1} parent=35 // pred_check
          %p253 = pneg %p57
        $region38: #{tpu_custom_call.1} parent=35 // pred_check_branch
          %255 = sbr.rel (%p253) target = $region40
        $region39: #{tpu_custom_call.1} parent=35 // pred_region
          %256 = dma.done %s249, 8192
        $region40: #{tpu_custom_call.1} parent=35 // pred_fallthru
          _
        // Predicated region
        $region41: #{tpu_custom_call.1} parent=35 // pred_check
          %p257 = pneg %p78
        $region42: #{tpu_custom_call.1} parent=35 // pred_check_branch
          %259 = sbr.rel (%p257) target = $region44
        $region43: #{tpu_custom_call.1} parent=35 // pred_region
          %260 = dma.done [#allocation7], 4096
        $region44: #{tpu_custom_call.1} parent=35 // pred_fallthru
          _
        %s261 = sand.u32 %s22, 1
        %s262 = scalar_lea.sflag [#allocation4], %s261
        %s263 = sand.u32 %s91, 1
        %s264 = smul.addr %s263, 256
        %s265 = scalar_lea.vmem [#allocation8], %s264
        // Predicated region
        $region45: #{tpu_custom_call.1} parent=35 // pred_check
          %p266 = pneg %p104
        $region46: #{tpu_custom_call.1} parent=35 // pred_check_branch
          %268 = sbr.rel (%p266) target = $region48
        $region47: #{tpu_custom_call.1} parent=35 // pred_region
          %269 = dma.done %s262, 4096
        $region48: #{tpu_custom_call.1} parent=35 // pred_fallthru
          _
        // Predicated region
        $region49: #{tpu_custom_call.1} parent=35 // pred_check
          %p270 = pneg %p125
        $region50: #{tpu_custom_call.1} parent=35 // pred_check_branch
          %272 = sbr.rel (%p270) target = $region52
        $region51: #{tpu_custom_call.1} parent=35 // pred_region
          %273 = dma.done [#allocation7], 2048
        $region52: #{tpu_custom_call.1} parent=35 // pred_fallthru
          _
        %s274 = sand.u32 %s22, 1
        %s275 = scalar_lea.sflag [#allocation4], %s274
        %s276 = sand.u32 %s44, 1
        %s277 = smul.addr %s276, 512
        %s278 = scalar_lea.vmem [#allocation3], %s277
        %p279 = pneg %p57
        %p280 = pneg %p54
        %p281 = pneg %p78
        %p282 = pneg %p75
        %s283 = sand.u32 %s22, 1
        %s284 = scalar_lea.sflag [#allocation4], %s283
        %s285 = sand.u32 %s91, 1
        %s286 = smul.addr %s285, 256
        %s287 = scalar_lea.vmem [#allocation8], %s286
        %p288 = pneg %p104
        %p289 = pneg %p101
        %p290 = pneg %p125
        %p291 = pneg %p122
        %p292 = pneg %p151
        %p293 = pneg %p148
        %s294 = sand.u32 %s138, 1
        %s295 = scalar_lea.sflag [#allocation5], %s294
        %s296 = sand.u32 %s138, 1
        %s297 = smul.addr %s296, 256
        %s298 = scalar_lea.vmem [#allocation10], %s297
        %s299 = smul.u32 32, %s26
        %s300 = smul.u32 4, %s27
        %s301 = smul.u32 32, %s26
        %s302 = smul.u32 32, %s26
        %p304 = scmp.eq.s32.totalorder %s27, 0
        // Predicated region
        $region53: #{tpu_custom_call.1} parent=35 // pred_check
          %p305 = pneg %p304
        $region54: #{tpu_custom_call.1} parent=35 // pred_check_branch
          %307 = sbr.rel (%p305) target = $region56
        $region55: #{tpu_custom_call.1} parent=35 // pred_region
          %308 = vst [vmem:[#allocation2] sm:$0xff] 0.0
          %309 = vst [vmem:[#allocation2 + $0x8] sm:$0xff] 0.0
          %310 = vst [vmem:[#allocation2 + $0x10] sm:$0xff] 0.0
          %311 = vst [vmem:[#allocation2 + $0x18] sm:$0xff] 0.0
          %312 = vst [vmem:[#allocation2 + $0x20] sm:$0xff] 0.0
          %313 = vst [vmem:[#allocation2 + $0x28] sm:$0xff] 0.0
          %314 = vst [vmem:[#allocation2 + $0x30] sm:$0xff] 0.0
          %315 = vst [vmem:[#allocation2 + $0x38] sm:$0xff] 0.0
          %316 = vst [vmem:[#allocation2 + $0x40] sm:$0xff] 0.0
          %317 = vst [vmem:[#allocation2 + $0x48] sm:$0xff] 0.0
          %318 = vst [vmem:[#allocation2 + $0x50] sm:$0xff] 0.0
          %319 = vst [vmem:[#allocation2 + $0x58] sm:$0xff] 0.0
          %320 = vst [vmem:[#allocation2 + $0x60] sm:$0xff] 0.0
          %321 = vst [vmem:[#allocation2 + $0x68] sm:$0xff] 0.0
          %322 = vst [vmem:[#allocation2 + $0x70] sm:$0xff] 0.0
          %323 = vst [vmem:[#allocation2 + $0x78] sm:$0xff] 0.0
          %324 = vst [vmem:[#allocation2 + $0x80] sm:$0xff] 0.0
          %325 = vst [vmem:[#allocation2 + $0x88] sm:$0xff] 0.0
          %326 = vst [vmem:[#allocation2 + $0x90] sm:$0xff] 0.0
          %327 = vst [vmem:[#allocation2 + $0x98] sm:$0xff] 0.0
          %328 = vst [vmem:[#allocation2 + $0xa0] sm:$0xff] 0.0
          %329 = vst [vmem:[#allocation2 + $0xa8] sm:$0xff] 0.0
          %330 = vst [vmem:[#allocation2 + $0xb0] sm:$0xff] 0.0
          %331 = vst [vmem:[#allocation2 + $0xb8] sm:$0xff] 0.0
          %332 = vst [vmem:[#allocation2 + $0xc0] sm:$0xff] 0.0
          %333 = vst [vmem:[#allocation2 + $0xc8] sm:$0xff] 0.0
          %334 = vst [vmem:[#allocation2 + $0xd0] sm:$0xff] 0.0
          %335 = vst [vmem:[#allocation2 + $0xd8] sm:$0xff] 0.0
          %336 = vst [vmem:[#allocation2 + $0xe0] sm:$0xff] 0.0
          %337 = vst [vmem:[#allocation2 + $0xe8] sm:$0xff] 0.0
          %338 = vst [vmem:[#allocation2 + $0xf0] sm:$0xff] 0.0
          %339 = vst [vmem:[#allocation2 + $0xf8] sm:$0xff] 0.0
        $region56: #{tpu_custom_call.1} parent=35 // pred_fallthru
          _
        %s340 = smul.u32 %s27, 512
        %s341 = sshra.s32 %s340, 3
        %s342 = sand.u32 %s340, 7
        %s343 = smul.addr %s341, 4
        %s344 = scalar_lea.vmem [#allocation6], %s343
        %v345 = vld [vmem:[%s344] sm:$0xf]
        %v346 = vld [vmem:[%s344 + $0x4] sm:$0xf]
        %v347 = vld [vmem:[%s344 + $0x8] sm:$0xf]
        %v348 = vld [vmem:[%s344 + $0xc] sm:$0xf]
        %v349 = vld [vmem:[%s344 + $0x10] sm:$0xf]
        %v350 = vld [vmem:[%s344 + $0x14] sm:$0xf]
        %v351 = vld [vmem:[%s344 + $0x18] sm:$0xf]
        %v352 = vld [vmem:[%s344 + $0x1c] sm:$0xf]
        %v353 = vld [vmem:[%s344 + $0x20] sm:$0xf]
        %v354 = vld [vmem:[%s344 + $0x24] sm:$0xf]
        %v355 = vld [vmem:[%s344 + $0x28] sm:$0xf]
        %v356 = vld [vmem:[%s344 + $0x2c] sm:$0xf]
        %v357 = vld [vmem:[%s344 + $0x30] sm:$0xf]
        %v358 = vld [vmem:[%s344 + $0x34] sm:$0xf]
        %v359 = vld [vmem:[%s344 + $0x38] sm:$0xf]
        %v360 = vld [vmem:[%s344 + $0x3c] sm:$0xf]
        %v361 = vld [vmem:[%s344 + $0x40] sm:$0xf]
        %v362 = vld [vmem:[%s344 + $0x44] sm:$0xf]
        %v363 = vld [vmem:[%s344 + $0x48] sm:$0xf]
        %v364 = vld [vmem:[%s344 + $0x4c] sm:$0xf]
        %v365 = vld [vmem:[%s344 + $0x50] sm:$0xf]
        %v366 = vld [vmem:[%s344 + $0x54] sm:$0xf]
        %v367 = vld [vmem:[%s344 + $0x58] sm:$0xf]
        %v368 = vld [vmem:[%s344 + $0x5c] sm:$0xf]
        %v369 = vld [vmem:[%s344 + $0x60] sm:$0xf]
        %v370 = vld [vmem:[%s344 + $0x64] sm:$0xf]
        %v371 = vld [vmem:[%s344 + $0x68] sm:$0xf]
        %v372 = vld [vmem:[%s344 + $0x6c] sm:$0xf]
        %v373 = vld [vmem:[%s344 + $0x70] sm:$0xf]
        %v374 = vld [vmem:[%s344 + $0x74] sm:$0xf]
        %v375 = vld [vmem:[%s344 + $0x78] sm:$0xf]
        %v376 = vld [vmem:[%s344 + $0x7c] sm:$0xf]
        %v377 = vld [vmem:[%s344 + $0x80] sm:$0xf]
        %v378 = vld [vmem:[%s344 + $0x84] sm:$0xf]
        %v379 = vld [vmem:[%s344 + $0x88] sm:$0xf]
        %v380 = vld [vmem:[%s344 + $0x8c] sm:$0xf]
        %v381 = vld [vmem:[%s344 + $0x90] sm:$0xf]
        %v382 = vld [vmem:[%s344 + $0x94] sm:$0xf]
        %v383 = vld [vmem:[%s344 + $0x98] sm:$0xf]
        %v384 = vld [vmem:[%s344 + $0x9c] sm:$0xf]
        %v385 = vld [vmem:[%s344 + $0xa0] sm:$0xf]
        %v386 = vld [vmem:[%s344 + $0xa4] sm:$0xf]
        %v387 = vld [vmem:[%s344 + $0xa8] sm:$0xf]
        %v388 = vld [vmem:[%s344 + $0xac] sm:$0xf]
        %v389 = vld [vmem:[%s344 + $0xb0] sm:$0xf]
        %v390 = vld [vmem:[%s344 + $0xb4] sm:$0xf]
        %v391 = vld [vmem:[%s344 + $0xb8] sm:$0xf]
        %v392 = vld [vmem:[%s344 + $0xbc] sm:$0xf]
        %v393 = vld [vmem:[%s344 + $0xc0] sm:$0xf]
        %v394 = vld [vmem:[%s344 + $0xc4] sm:$0xf]
        %v395 = vld [vmem:[%s344 + $0xc8] sm:$0xf]
        %v396 = vld [vmem:[%s344 + $0xcc] sm:$0xf]
        %v397 = vld [vmem:[%s344 + $0xd0] sm:$0xf]
        %v398 = vld [vmem:[%s344 + $0xd4] sm:$0xf]
        %v399 = vld [vmem:[%s344 + $0xd8] sm:$0xf]
        %v400 = vld [vmem:[%s344 + $0xdc] sm:$0xf]
        %v401 = vld [vmem:[%s344 + $0xe0] sm:$0xf]
        %v402 = vld [vmem:[%s344 + $0xe4] sm:$0xf]
        %v403 = vld [vmem:[%s344 + $0xe8] sm:$0xf]
        %v404 = vld [vmem:[%s344 + $0xec] sm:$0xf]
        %v405 = vld [vmem:[%s344 + $0xf0] sm:$0xf]
        %v406 = vld [vmem:[%s344 + $0xf4] sm:$0xf]
        %v407 = vld [vmem:[%s344 + $0xf8] sm:$0xf]
        %v408 = vld [vmem:[%s344 + $0xfc] sm:$0xf]
        %v409 = vld [vmem:[#allocation2] sm:$0xff]
        %v410 = vld [vmem:[#allocation2 + $0x8] sm:$0xff]
        %v411 = vld [vmem:[#allocation2 + $0x10] sm:$0xff]
        %v412 = vld [vmem:[#allocation2 + $0x18] sm:$0xff]
        %v413 = vld [vmem:[#allocation2 + $0x20] sm:$0xff]
        %v414 = vld [vmem:[#allocation2 + $0x28] sm:$0xff]
        %v415 = vld [vmem:[#allocation2 + $0x30] sm:$0xff]
        %v416 = vld [vmem:[#allocation2 + $0x38] sm:$0xff]
        %v417 = vld [vmem:[#allocation2 + $0x40] sm:$0xff]
        %v418 = vld [vmem:[#allocation2 + $0x48] sm:$0xff]
        %v419 = vld [vmem:[#allocation2 + $0x50] sm:$0xff]
        %v420 = vld [vmem:[#allocation2 + $0x58] sm:$0xff]
        %v421 = vld [vmem:[#allocation2 + $0x60] sm:$0xff]
        %v422 = vld [vmem:[#allocation2 + $0x68] sm:$0xff]
        %v423 = vld [vmem:[#allocation2 + $0x70] sm:$0xff]
        %v424 = vld [vmem:[#allocation2 + $0x78] sm:$0xff]
        %v425 = vld [vmem:[#allocation2 + $0x80] sm:$0xff]
        %v426 = vld [vmem:[#allocation2 + $0x88] sm:$0xff]
        %v427 = vld [vmem:[#allocation2 + $0x90] sm:$0xff]
        %v428 = vld [vmem:[#allocation2 + $0x98] sm:$0xff]
        %v429 = vld [vmem:[#allocation2 + $0xa0] sm:$0xff]
        %v430 = vld [vmem:[#allocation2 + $0xa8] sm:$0xff]
        %v431 = vld [vmem:[#allocation2 + $0xb0] sm:$0xff]
        %v432 = vld [vmem:[#allocation2 + $0xb8] sm:$0xff]
        %v433 = vld [vmem:[#allocation2 + $0xc0] sm:$0xff]
        %v434 = vld [vmem:[#allocation2 + $0xc8] sm:$0xff]
        %v435 = vld [vmem:[#allocation2 + $0xd0] sm:$0xff]
        %v436 = vld [vmem:[#allocation2 + $0xd8] sm:$0xff]
        %v437 = vld [vmem:[#allocation2 + $0xe0] sm:$0xff]
        %v438 = vld [vmem:[#allocation2 + $0xe8] sm:$0xff]
        %v439 = vld [vmem:[#allocation2 + $0xf0] sm:$0xff]
        %v440 = vld [vmem:[#allocation2 + $0xf8] sm:$0xff]
        %v441 = vld [vmem:[%s252] sm:$0xff]
        %v442 = vld [vmem:[%s252 + $0x8] sm:$0xff]
        %v443 = vld [vmem:[%s252 + $0x10] sm:$0xff]
        %v444 = vld [vmem:[%s252 + $0x18] sm:$0xff]
        %v445 = vld [vmem:[%s252 + $0x20] sm:$0xff]
        %v446 = vld [vmem:[%s252 + $0x28] sm:$0xff]
        %v447 = vld [vmem:[%s252 + $0x30] sm:$0xff]
        %v448 = vld [vmem:[%s252 + $0x38] sm:$0xff]
        %v449 = vld [vmem:[%s252 + $0x40] sm:$0xff]
        %v450 = vld [vmem:[%s252 + $0x48] sm:$0xff]
        %v451 = vld [vmem:[%s252 + $0x50] sm:$0xff]
        %v452 = vld [vmem:[%s252 + $0x58] sm:$0xff]
        %v453 = vld [vmem:[%s252 + $0x60] sm:$0xff]
        %v454 = vld [vmem:[%s252 + $0x68] sm:$0xff]
        %v455 = vld [vmem:[%s252 + $0x70] sm:$0xff]
        %v456 = vld [vmem:[%s252 + $0x78] sm:$0xff]
        %v457 = vld [vmem:[%s252 + $0x80] sm:$0xff]
        %v458 = vld [vmem:[%s252 + $0x88] sm:$0xff]
        %v459 = vld [vmem:[%s252 + $0x90] sm:$0xff]
        %v460 = vld [vmem:[%s252 + $0x98] sm:$0xff]
        %v461 = vld [vmem:[%s252 + $0xa0] sm:$0xff]
        %v462 = vld [vmem:[%s252 + $0xa8] sm:$0xff]
        %v463 = vld [vmem:[%s252 + $0xb0] sm:$0xff]
        %v464 = vld [vmem:[%s252 + $0xb8] sm:$0xff]
        %v465 = vld [vmem:[%s252 + $0xc0] sm:$0xff]
        %v466 = vld [vmem:[%s252 + $0xc8] sm:$0xff]
        %v467 = vld [vmem:[%s252 + $0xd0] sm:$0xff]
        %v468 = vld [vmem:[%s252 + $0xd8] sm:$0xff]
        %v469 = vld [vmem:[%s252 + $0xe0] sm:$0xff]
        %v470 = vld [vmem:[%s252 + $0xe8] sm:$0xff]
        %v471 = vld [vmem:[%s252 + $0xf0] sm:$0xff]
        %v472 = vld [vmem:[%s252 + $0xf8] sm:$0xff]
        %v473 = vld [vmem:[%s252 + $0x100] sm:$0xff]
        %v474 = vld [vmem:[%s252 + $0x108] sm:$0xff]
        %v475 = vld [vmem:[%s252 + $0x110] sm:$0xff]
        %v476 = vld [vmem:[%s252 + $0x118] sm:$0xff]
        %v477 = vld [vmem:[%s252 + $0x120] sm:$0xff]
        %v478 = vld [vmem:[%s252 + $0x128] sm:$0xff]
        %v479 = vld [vmem:[%s252 + $0x130] sm:$0xff]
        %v480 = vld [vmem:[%s252 + $0x138] sm:$0xff]
        %v481 = vld [vmem:[%s252 + $0x140] sm:$0xff]
        %v482 = vld [vmem:[%s252 + $0x148] sm:$0xff]
        %v483 = vld [vmem:[%s252 + $0x150] sm:$0xff]
        %v484 = vld [vmem:[%s252 + $0x158] sm:$0xff]
        %v485 = vld [vmem:[%s252 + $0x160] sm:$0xff]
        %v486 = vld [vmem:[%s252 + $0x168] sm:$0xff]
        %v487 = vld [vmem:[%s252 + $0x170] sm:$0xff]
        %v488 = vld [vmem:[%s252 + $0x178] sm:$0xff]
        %v489 = vld [vmem:[%s252 + $0x180] sm:$0xff]
        %v490 = vld [vmem:[%s252 + $0x188] sm:$0xff]
        %v491 = vld [vmem:[%s252 + $0x190] sm:$0xff]
        %v492 = vld [vmem:[%s252 + $0x198] sm:$0xff]
        %v493 = vld [vmem:[%s252 + $0x1a0] sm:$0xff]
        %v494 = vld [vmem:[%s252 + $0x1a8] sm:$0xff]
        %v495 = vld [vmem:[%s252 + $0x1b0] sm:$0xff]
        %v496 = vld [vmem:[%s252 + $0x1b8] sm:$0xff]
        %v497 = vld [vmem:[%s252 + $0x1c0] sm:$0xff]
        %v498 = vld [vmem:[%s252 + $0x1c8] sm:$0xff]
        %v499 = vld [vmem:[%s252 + $0x1d0] sm:$0xff]
        %v500 = vld [vmem:[%s252 + $0x1d8] sm:$0xff]
        %v501 = vld [vmem:[%s252 + $0x1e0] sm:$0xff]
        %v502 = vld [vmem:[%s252 + $0x1e8] sm:$0xff]
        %v503 = vld [vmem:[%s252 + $0x1f0] sm:$0xff]
        %v504 = vld [vmem:[%s252 + $0x1f8] sm:$0xff]
        %v569 = vunpack.c.l.b16 %v441
        %v570 = vunpack.c.h.b16 %v441
        %v571 = vunpack.c.l.b16 %v442
        %v572 = vunpack.c.h.b16 %v442
        %v573 = vunpack.c.l.b16 %v443
        %v574 = vunpack.c.h.b16 %v443
        %v575 = vunpack.c.l.b16 %v444
        %v576 = vunpack.c.h.b16 %v444
        %v577 = vunpack.c.l.b16 %v445
        %v578 = vunpack.c.h.b16 %v445
        %v579 = vunpack.c.l.b16 %v446
        %v580 = vunpack.c.h.b16 %v446
        %v581 = vunpack.c.l.b16 %v447
        %v582 = vunpack.c.h.b16 %v447
        %v583 = vunpack.c.l.b16 %v448
        %v584 = vunpack.c.h.b16 %v448
        %v585 = vunpack.c.l.b16 %v449
        %v586 = vunpack.c.h.b16 %v449
        %v587 = vunpack.c.l.b16 %v450
        %v588 = vunpack.c.h.b16 %v450
        %v589 = vunpack.c.l.b16 %v451
        %v590 = vunpack.c.h.b16 %v451
        %v591 = vunpack.c.l.b16 %v452
        %v592 = vunpack.c.h.b16 %v452
        %v593 = vunpack.c.l.b16 %v453
        %v594 = vunpack.c.h.b16 %v453
        %v595 = vunpack.c.l.b16 %v454
        %v596 = vunpack.c.h.b16 %v454
        %v597 = vunpack.c.l.b16 %v455
        %v598 = vunpack.c.h.b16 %v455
        %v599 = vunpack.c.l.b16 %v456
        %v600 = vunpack.c.h.b16 %v456
        %v601 = vunpack.c.l.b16 %v457
        %v602 = vunpack.c.h.b16 %v457
        %v603 = vunpack.c.l.b16 %v458
        %v604 = vunpack.c.h.b16 %v458
        %v605 = vunpack.c.l.b16 %v459
        %v606 = vunpack.c.h.b16 %v459
        %v607 = vunpack.c.l.b16 %v460
        %v608 = vunpack.c.h.b16 %v460
        %v609 = vunpack.c.l.b16 %v461
        %v610 = vunpack.c.h.b16 %v461
        %v611 = vunpack.c.l.b16 %v462
        %v612 = vunpack.c.h.b16 %v462
        %v613 = vunpack.c.l.b16 %v463
        %v614 = vunpack.c.h.b16 %v463
        %v615 = vunpack.c.l.b16 %v464
        %v616 = vunpack.c.h.b16 %v464
        %v617 = vunpack.c.l.b16 %v465
        %v618 = vunpack.c.h.b16 %v465
        %v619 = vunpack.c.l.b16 %v466
        %v620 = vunpack.c.h.b16 %v466
        %v621 = vunpack.c.l.b16 %v467
        %v622 = vunpack.c.h.b16 %v467
        %v623 = vunpack.c.l.b16 %v468
        %v624 = vunpack.c.h.b16 %v468
        %v625 = vunpack.c.l.b16 %v469
        %v626 = vunpack.c.h.b16 %v469
        %v627 = vunpack.c.l.b16 %v470
        %v628 = vunpack.c.h.b16 %v470
        %v629 = vunpack.c.l.b16 %v471
        %v630 = vunpack.c.h.b16 %v471
        %v631 = vunpack.c.l.b16 %v472
        %v632 = vunpack.c.h.b16 %v472
        %v633 = vunpack.c.l.b16 %v473
        %v634 = vunpack.c.h.b16 %v473
        %v635 = vunpack.c.l.b16 %v474
        %v636 = vunpack.c.h.b16 %v474
        %v637 = vunpack.c.l.b16 %v475
        %v638 = vunpack.c.h.b16 %v475
        %v639 = vunpack.c.l.b16 %v476
        %v640 = vunpack.c.h.b16 %v476
        %v641 = vunpack.c.l.b16 %v477
        %v642 = vunpack.c.h.b16 %v477
        %v643 = vunpack.c.l.b16 %v478
        %v644 = vunpack.c.h.b16 %v478
        %v645 = vunpack.c.l.b16 %v479
        %v646 = vunpack.c.h.b16 %v479
        %v647 = vunpack.c.l.b16 %v480
        %v648 = vunpack.c.h.b16 %v480
        %v649 = vunpack.c.l.b16 %v481
        %v650 = vunpack.c.h.b16 %v481
        %v651 = vunpack.c.l.b16 %v482
        %v652 = vunpack.c.h.b16 %v482
        %v653 = vunpack.c.l.b16 %v483
        %v654 = vunpack.c.h.b16 %v483
        %v655 = vunpack.c.l.b16 %v484
        %v656 = vunpack.c.h.b16 %v484
        %v657 = vunpack.c.l.b16 %v485
        %v658 = vunpack.c.h.b16 %v485
        %v659 = vunpack.c.l.b16 %v486
        %v660 = vunpack.c.h.b16 %v486
        %v661 = vunpack.c.l.b16 %v487
        %v662 = vunpack.c.h.b16 %v487
        %v663 = vunpack.c.l.b16 %v488
        %v664 = vunpack.c.h.b16 %v488
        %v665 = vunpack.c.l.b16 %v489
        %v666 = vunpack.c.h.b16 %v489
        %v667 = vunpack.c.l.b16 %v490
        %v668 = vunpack.c.h.b16 %v490
        %v669 = vunpack.c.l.b16 %v491
        %v670 = vunpack.c.h.b16 %v491
        %v671 = vunpack.c.l.b16 %v492
        %v672 = vunpack.c.h.b16 %v492
        %v673 = vunpack.c.l.b16 %v493
        %v674 = vunpack.c.h.b16 %v493
        %v675 = vunpack.c.l.b16 %v494
        %v676 = vunpack.c.h.b16 %v494
        %v677 = vunpack.c.l.b16 %v495
        %v678 = vunpack.c.h.b16 %v495
        %v679 = vunpack.c.l.b16 %v496
        %v680 = vunpack.c.h.b16 %v496
        %v681 = vunpack.c.l.b16 %v497
        %v682 = vunpack.c.h.b16 %v497
        %v683 = vunpack.c.l.b16 %v498
        %v684 = vunpack.c.h.b16 %v498
        %v685 = vunpack.c.l.b16 %v499
        %v686 = vunpack.c.h.b16 %v499
        %v687 = vunpack.c.l.b16 %v500
        %v688 = vunpack.c.h.b16 %v500
        %v689 = vunpack.c.l.b16 %v501
        %v690 = vunpack.c.h.b16 %v501
        %v691 = vunpack.c.l.b16 %v502
        %v692 = vunpack.c.h.b16 %v502
        %v693 = vunpack.c.l.b16 %v503
        %v694 = vunpack.c.h.b16 %v503
        %v695 = vunpack.c.l.b16 %v504
        %v696 = vunpack.c.h.b16 %v504
        %v697 = vpack.c.b16 %v573, %v569
        %v698 = vpack.c.b16 %v574, %v570
        %v699 = vpack.c.b16 %v575, %v571
        %v700 = vpack.c.b16 %v576, %v572
        %v701 = vpack.c.b16 %v581, %v577
        %v702 = vpack.c.b16 %v582, %v578
        %v703 = vpack.c.b16 %v583, %v579
        %v704 = vpack.c.b16 %v584, %v580
        %v705 = vpack.c.b16 %v589, %v585
        %v706 = vpack.c.b16 %v590, %v586
        %v707 = vpack.c.b16 %v591, %v587
        %v708 = vpack.c.b16 %v592, %v588
        %v709 = vpack.c.b16 %v597, %v593
        %v710 = vpack.c.b16 %v598, %v594
        %v711 = vpack.c.b16 %v599, %v595
        %v712 = vpack.c.b16 %v600, %v596
        %v713 = vpack.c.b16 %v605, %v601
        %v714 = vpack.c.b16 %v606, %v602
        %v715 = vpack.c.b16 %v607, %v603
        %v716 = vpack.c.b16 %v608, %v604
        %v717 = vpack.c.b16 %v613, %v609
        %v718 = vpack.c.b16 %v614, %v610
        %v719 = vpack.c.b16 %v615, %v611
        %v720 = vpack.c.b16 %v616, %v612
        %v721 = vpack.c.b16 %v621, %v617
        %v722 = vpack.c.b16 %v622, %v618
        %v723 = vpack.c.b16 %v623, %v619
        %v724 = vpack.c.b16 %v624, %v620
        %v725 = vpack.c.b16 %v629, %v625
        %v726 = vpack.c.b16 %v630, %v626
        %v727 = vpack.c.b16 %v631, %v627
        %v728 = vpack.c.b16 %v632, %v628
        %v729 = vpack.c.b16 %v637, %v633
        %v730 = vpack.c.b16 %v638, %v634
        %v731 = vpack.c.b16 %v639, %v635
        %v732 = vpack.c.b16 %v640, %v636
        %v733 = vpack.c.b16 %v645, %v641
        %v734 = vpack.c.b16 %v646, %v642
        %v735 = vpack.c.b16 %v647, %v643
        %v736 = vpack.c.b16 %v648, %v644
        %v737 = vpack.c.b16 %v653, %v649
        %v738 = vpack.c.b16 %v654, %v650
        %v739 = vpack.c.b16 %v655, %v651
        %v740 = vpack.c.b16 %v656, %v652
        %v741 = vpack.c.b16 %v661, %v657
        %v742 = vpack.c.b16 %v662, %v658
        %v743 = vpack.c.b16 %v663, %v659
        %v744 = vpack.c.b16 %v664, %v660
        %v745 = vpack.c.b16 %v669, %v665
        %v746 = vpack.c.b16 %v670, %v666
        %v747 = vpack.c.b16 %v671, %v667
        %v748 = vpack.c.b16 %v672, %v668
        %v749 = vpack.c.b16 %v677, %v673
        %v750 = vpack.c.b16 %v678, %v674
        %v751 = vpack.c.b16 %v679, %v675
        %v752 = vpack.c.b16 %v680, %v676
        %v753 = vpack.c.b16 %v685, %v681
        %v754 = vpack.c.b16 %v686, %v682
        %v755 = vpack.c.b16 %v687, %v683
        %v756 = vpack.c.b16 %v688, %v684
        %v757 = vpack.c.b16 %v693, %v689
        %v758 = vpack.c.b16 %v694, %v690
        %v759 = vpack.c.b16 %v695, %v691
        %v760 = vpack.c.b16 %v696, %v692
        %v889 = vunpack.c.l.b16 %v345
        %v890 = vunpack.c.l.b16 %v346
        %v891 = vunpack.c.l.b16 %v347
        %v892 = vunpack.c.l.b16 %v348
        %v893 = vunpack.c.l.b16 %v349
        %v894 = vunpack.c.l.b16 %v350
        %v895 = vunpack.c.l.b16 %v351
        %v896 = vunpack.c.l.b16 %v352
        %v897 = vunpack.c.l.b16 %v353
        %v898 = vunpack.c.l.b16 %v354
        %v899 = vunpack.c.l.b16 %v355
        %v900 = vunpack.c.l.b16 %v356
        %v901 = vunpack.c.l.b16 %v357
        %v902 = vunpack.c.l.b16 %v358
        %v903 = vunpack.c.l.b16 %v359
        %v904 = vunpack.c.l.b16 %v360
        %v905 = vunpack.c.l.b16 %v361
        %v906 = vunpack.c.l.b16 %v362
        %v907 = vunpack.c.l.b16 %v363
        %v908 = vunpack.c.l.b16 %v364
        %v909 = vunpack.c.l.b16 %v365
        %v910 = vunpack.c.l.b16 %v366
        %v911 = vunpack.c.l.b16 %v367
        %v912 = vunpack.c.l.b16 %v368
        %v913 = vunpack.c.l.b16 %v369
        %v914 = vunpack.c.l.b16 %v370
        %v915 = vunpack.c.l.b16 %v371
        %v916 = vunpack.c.l.b16 %v372
        %v917 = vunpack.c.l.b16 %v373
        %v918 = vunpack.c.l.b16 %v374
        %v919 = vunpack.c.l.b16 %v375
        %v920 = vunpack.c.l.b16 %v376
        %v921 = vunpack.c.l.b16 %v377
        %v922 = vunpack.c.l.b16 %v378
        %v923 = vunpack.c.l.b16 %v379
        %v924 = vunpack.c.l.b16 %v380
        %v925 = vunpack.c.l.b16 %v381
        %v926 = vunpack.c.l.b16 %v382
        %v927 = vunpack.c.l.b16 %v383
        %v928 = vunpack.c.l.b16 %v384
        %v929 = vunpack.c.l.b16 %v385
        %v930 = vunpack.c.l.b16 %v386
        %v931 = vunpack.c.l.b16 %v387
        %v932 = vunpack.c.l.b16 %v388
        %v933 = vunpack.c.l.b16 %v389
        %v934 = vunpack.c.l.b16 %v390
        %v935 = vunpack.c.l.b16 %v391
        %v936 = vunpack.c.l.b16 %v392
        %v937 = vunpack.c.l.b16 %v393
        %v938 = vunpack.c.l.b16 %v394
        %v939 = vunpack.c.l.b16 %v395
        %v940 = vunpack.c.l.b16 %v396
        %v941 = vunpack.c.l.b16 %v397
        %v942 = vunpack.c.l.b16 %v398
        %v943 = vunpack.c.l.b16 %v399
        %v944 = vunpack.c.l.b16 %v400
        %v945 = vunpack.c.l.b16 %v401
        %v946 = vunpack.c.l.b16 %v402
        %v947 = vunpack.c.l.b16 %v403
        %v948 = vunpack.c.l.b16 %v404
        %v949 = vunpack.c.l.b16 %v405
        %v950 = vunpack.c.l.b16 %v406
        %v951 = vunpack.c.l.b16 %v407
        %v952 = vunpack.c.l.b16 %v408
        %v953 = vpack.c.b16 %v890, %v889
        %v954 = vpack.c.b16 %v892, %v891
        %v955 = vpack.c.b16 %v894, %v893
        %v956 = vpack.c.b16 %v896, %v895
        %v957 = vpack.c.b16 %v898, %v897
        %v958 = vpack.c.b16 %v900, %v899
        %v959 = vpack.c.b16 %v902, %v901
        %v960 = vpack.c.b16 %v904, %v903
        %v961 = vpack.c.b16 %v906, %v905
        %v962 = vpack.c.b16 %v908, %v907
        %v963 = vpack.c.b16 %v910, %v909
        %v964 = vpack.c.b16 %v912, %v911
        %v965 = vpack.c.b16 %v914, %v913
        %v966 = vpack.c.b16 %v916, %v915
        %v967 = vpack.c.b16 %v918, %v917
        %v968 = vpack.c.b16 %v920, %v919
        %v969 = vpack.c.b16 %v922, %v921
        %v970 = vpack.c.b16 %v924, %v923
        %v971 = vpack.c.b16 %v926, %v925
        %v972 = vpack.c.b16 %v928, %v927
        %v973 = vpack.c.b16 %v930, %v929
        %v974 = vpack.c.b16 %v932, %v931
        %v975 = vpack.c.b16 %v934, %v933
        %v976 = vpack.c.b16 %v936, %v935
        %v977 = vpack.c.b16 %v938, %v937
        %v978 = vpack.c.b16 %v940, %v939
        %v979 = vpack.c.b16 %v942, %v941
        %v980 = vpack.c.b16 %v944, %v943
        %v981 = vpack.c.b16 %v946, %v945
        %v982 = vpack.c.b16 %v948, %v947
        %v983 = vpack.c.b16 %v950, %v949
        %v984 = vpack.c.b16 %v952, %v951
        %1017 = vmatprep.subr.bf16.mxu0 0
        %1018 = vmatpush1.bf16.msra.mxu0 %v960
        %1019 = vmatprep.subr.bf16.mxu0 0
        %1020 = vmatpush1.bf16.msra.mxu0 %v959
        %1021 = vmatprep.subr.bf16.mxu0 0
        %1022 = vmatpush1.bf16.msra.mxu0 %v958
        %1023 = vmatprep.subr.bf16.mxu0 0
        %1024 = vmatpush1.bf16.msra.mxu0 %v957
        %1025 = vmatprep.subr.bf16.mxu0 0
        %1026 = vmatpush1.bf16.msra.mxu0 %v956
        %1027 = vmatprep.subr.bf16.mxu0 0
        %1028 = vmatpush1.bf16.msra.mxu0 %v955
        %1029 = vmatprep.subr.bf16.mxu0 0
        %1030 = vmatpush1.bf16.msra.mxu0 %v954
        %1031 = vmatprep.subr.bf16.mxu0 0
        %1032 = vmatpush1.bf16.msra.mxu0 %v953
        %1033 = vmatprep.subr.bf16.mxu0 0
        %1034 = vmatpush2.bf16.msra.mxu0 %v968
        %1035 = vmatprep.subr.bf16.mxu0 0
        %1036 = vmatpush2.bf16.msra.mxu0 %v967
        %1037 = vmatprep.subr.bf16.mxu0 0
        %1038 = vmatpush2.bf16.msra.mxu0 %v966
        %1039 = vmatprep.subr.bf16.mxu0 0
        %1040 = vmatpush2.bf16.msra.mxu0 %v965
        %1041 = vmatprep.subr.bf16.mxu0 0
        %1042 = vmatpush2.bf16.msra.mxu0 %v964
        %1043 = vmatprep.subr.bf16.mxu0 0
        %1044 = vmatpush2.bf16.msra.mxu0 %v963
        %1045 = vmatprep.subr.bf16.mxu0 0
        %1046 = vmatpush2.bf16.msra.mxu0 %v962
        %1047 = vmatprep.subr.bf16.mxu0 0
        %1048 = vmatpush2.bf16.msra.mxu0 %v961
        %1049 = vmatprep.mubr.bf16.mxu0 %v698
        %1050 = vmatmul.mubr.bf16.gmra.mxu0 %v697
        %v1051 = vpop.f32.mrf.mxu0
        %v1052 = vadd.f32 0.0, %v1051
        %v1053 = vpop.f32.mrf.mxu0
        %v1054 = vpop.f32.mrf.mxu0
        %v1055 = vadd.f32 0.0, %v1054
        %v1056 = vpop.f32.mrf.mxu0
        %1057 = vmatprep.mubr.bf16.mxu0 %v702
        %1058 = vmatmul.mubr.bf16.gmra.mxu0 %v701
        %v1059 = vpop.f32.mrf.mxu0
        %v1060 = vadd.f32 0.0, %v1059
        %v1061 = vpop.f32.mrf.mxu0
        %v1062 = vpop.f32.mrf.mxu0
        %v1063 = vadd.f32 0.0, %v1062
        %v1064 = vpop.f32.mrf.mxu0
        %1065 = vmatprep.mubr.bf16.mxu0 %v706
        %1066 = vmatmul.mubr.bf16.gmra.mxu0 %v705
        %v1067 = vpop.f32.mrf.mxu0
        %v1068 = vadd.f32 0.0, %v1067
        %v1069 = vpop.f32.mrf.mxu0
        %v1070 = vpop.f32.mrf.mxu0
        %v1071 = vadd.f32 0.0, %v1070
        %v1072 = vpop.f32.mrf.mxu0
        %1073 = vmatprep.mubr.bf16.mxu0 %v710
        %1074 = vmatmul.mubr.bf16.gmra.mxu0 %v709
        %v1075 = vpop.f32.mrf.mxu0
        %v1076 = vadd.f32 0.0, %v1075
        %v1077 = vpop.f32.mrf.mxu0
        %v1078 = vpop.f32.mrf.mxu0
        %v1079 = vadd.f32 0.0, %v1078
        %v1080 = vpop.f32.mrf.mxu0
        %1081 = vmatprep.mubr.bf16.mxu0 %v714
        %1082 = vmatmul.mubr.bf16.gmra.mxu0 %v713
        %v1083 = vpop.f32.mrf.mxu0
        %v1084 = vadd.f32 0.0, %v1083
        %v1085 = vpop.f32.mrf.mxu0
        %v1086 = vpop.f32.mrf.mxu0
        %v1087 = vadd.f32 0.0, %v1086
        %v1088 = vpop.f32.mrf.mxu0
        %1089 = vmatprep.mubr.bf16.mxu0 %v718
        %1090 = vmatmul.mubr.bf16.gmra.mxu0 %v717
        %v1091 = vpop.f32.mrf.mxu0
        %v1092 = vadd.f32 0.0, %v1091
        %v1093 = vpop.f32.mrf.mxu0
        %v1094 = vpop.f32.mrf.mxu0
        %v1095 = vadd.f32 0.0, %v1094
        %v1096 = vpop.f32.mrf.mxu0
        %1097 = vmatprep.mubr.bf16.mxu0 %v722
        %1098 = vmatmul.mubr.bf16.gmra.mxu0 %v721
        %v1099 = vpop.f32.mrf.mxu0
        %v1100 = vadd.f32 0.0, %v1099
        %v1101 = vpop.f32.mrf.mxu0
        %v1102 = vpop.f32.mrf.mxu0
        %v1103 = vadd.f32 0.0, %v1102
        %v1104 = vpop.f32.mrf.mxu0
        %1105 = vmatprep.mubr.bf16.mxu0 %v726
        %1106 = vmatmul.mubr.bf16.gmra.mxu0 %v725
        %v1107 = vpop.f32.mrf.mxu0
        %v1108 = vadd.f32 0.0, %v1107
        %v1109 = vpop.f32.mrf.mxu0
        %v1110 = vpop.f32.mrf.mxu0
        %v1111 = vadd.f32 0.0, %v1110
        %v1112 = vpop.f32.mrf.mxu0
        %1113 = vmatprep.mubr.bf16.mxu0 %v730
        %1114 = vmatmul.mubr.bf16.gmra.mxu0 %v729
        %v1115 = vpop.f32.mrf.mxu0
        %v1116 = vadd.f32 0.0, %v1115
        %v1117 = vpop.f32.mrf.mxu0
        %v1118 = vpop.f32.mrf.mxu0
        %v1119 = vadd.f32 0.0, %v1118
        %v1120 = vpop.f32.mrf.mxu0
        %1121 = vmatprep.mubr.bf16.mxu0 %v734
        %1122 = vmatmul.mubr.bf16.gmra.mxu0 %v733
        %v1123 = vpop.f32.mrf.mxu0
        %v1124 = vadd.f32 0.0, %v1123
        %v1125 = vpop.f32.mrf.mxu0
        %v1126 = vpop.f32.mrf.mxu0
        %v1127 = vadd.f32 0.0, %v1126
        %v1128 = vpop.f32.mrf.mxu0
        %1129 = vmatprep.mubr.bf16.mxu0 %v738
        %1130 = vmatmul.mubr.bf16.gmra.mxu0 %v737
        %v1131 = vpop.f32.mrf.mxu0
        %v1132 = vadd.f32 0.0, %v1131
        %v1133 = vpop.f32.mrf.mxu0
        %v1134 = vpop.f32.mrf.mxu0
        %v1135 = vadd.f32 0.0, %v1134
        %v1136 = vpop.f32.mrf.mxu0
        %1137 = vmatprep.mubr.bf16.mxu0 %v742
        %1138 = vmatmul.mubr.bf16.gmra.mxu0 %v741
        %v1139 = vpop.f32.mrf.mxu0
        %v1140 = vadd.f32 0.0, %v1139
        %v1141 = vpop.f32.mrf.mxu0
        %v1142 = vpop.f32.mrf.mxu0
        %v1143 = vadd.f32 0.0, %v1142
        %v1144 = vpop.f32.mrf.mxu0
        %1145 = vmatprep.mubr.bf16.mxu0 %v746
        %1146 = vmatmul.mubr.bf16.gmra.mxu0 %v745
        %v1147 = vpop.f32.mrf.mxu0
        %v1148 = vadd.f32 0.0, %v1147
        %v1149 = vpop.f32.mrf.mxu0
        %v1150 = vpop.f32.mrf.mxu0
        %v1151 = vadd.f32 0.0, %v1150
        %v1152 = vpop.f32.mrf.mxu0
        %1153 = vmatprep.mubr.bf16.mxu0 %v750
        %1154 = vmatmul.mubr.bf16.gmra.mxu0 %v749
        %v1155 = vpop.f32.mrf.mxu0
        %v1156 = vadd.f32 0.0, %v1155
        %v1157 = vpop.f32.mrf.mxu0
        %v1158 = vpop.f32.mrf.mxu0
        %v1159 = vadd.f32 0.0, %v1158
        %v1160 = vpop.f32.mrf.mxu0
        %1161 = vmatprep.mubr.bf16.mxu0 %v754
        %1162 = vmatmul.mubr.bf16.gmra.mxu0 %v753
        %v1163 = vpop.f32.mrf.mxu0
        %v1164 = vadd.f32 0.0, %v1163
        %v1165 = vpop.f32.mrf.mxu0
        %v1166 = vpop.f32.mrf.mxu0
        %v1167 = vadd.f32 0.0, %v1166
        %v1168 = vpop.f32.mrf.mxu0
        %1169 = vmatprep.mubr.bf16.mxu0 %v758
        %1170 = vmatmul.mubr.bf16.gmra.mxu0 %v757
        %v1171 = vpop.f32.mrf.mxu0
        %v1172 = vadd.f32 0.0, %v1171
        %v1173 = vpop.f32.mrf.mxu0
        %v1174 = vpop.f32.mrf.mxu0
        %v1175 = vadd.f32 0.0, %v1174
        %v1176 = vpop.f32.mrf.mxu0
        %1177 = vdwg.mxu0
        %1178 = vmatprep.subr.bf16.mxu0 0
        %1179 = vmatpush1.bf16.msra.mxu0 %v976
        %1180 = vmatprep.subr.bf16.mxu0 0
        %1181 = vmatpush1.bf16.msra.mxu0 %v975
        %1182 = vmatprep.subr.bf16.mxu0 0
        %1183 = vmatpush1.bf16.msra.mxu0 %v974
        %1184 = vmatprep.subr.bf16.mxu0 0
        %1185 = vmatpush1.bf16.msra.mxu0 %v973
        %1186 = vmatprep.subr.bf16.mxu0 0
        %1187 = vmatpush1.bf16.msra.mxu0 %v972
        %1188 = vmatprep.subr.bf16.mxu0 0
        %1189 = vmatpush1.bf16.msra.mxu0 %v971
        %1190 = vmatprep.subr.bf16.mxu0 0
        %1191 = vmatpush1.bf16.msra.mxu0 %v970
        %1192 = vmatprep.subr.bf16.mxu0 0
        %1193 = vmatpush1.bf16.msra.mxu0 %v969
        %1194 = vmatprep.subr.bf16.mxu0 0
        %1195 = vmatpush2.bf16.msra.mxu0 %v984
        %1196 = vmatprep.subr.bf16.mxu0 0
        %1197 = vmatpush2.bf16.msra.mxu0 %v983
        %1198 = vmatprep.subr.bf16.mxu0 0
        %1199 = vmatpush2.bf16.msra.mxu0 %v982
        %1200 = vmatprep.subr.bf16.mxu0 0
        %1201 = vmatpush2.bf16.msra.mxu0 %v981
        %1202 = vmatprep.subr.bf16.mxu0 0
        %1203 = vmatpush2.bf16.msra.mxu0 %v980
        %1204 = vmatprep.subr.bf16.mxu0 0
        %1205 = vmatpush2.bf16.msra.mxu0 %v979
        %1206 = vmatprep.subr.bf16.mxu0 0
        %1207 = vmatpush2.bf16.msra.mxu0 %v978
        %1208 = vmatprep.subr.bf16.mxu0 0
        %1209 = vmatpush2.bf16.msra.mxu0 %v977
        %1210 = vmatprep.mubr.bf16.mxu0 %v700
        %1211 = vmatmul.mubr.bf16.gmra.mxu0 %v699
        %v1212 = vpop.f32.mrf.mxu0
        %v1213 = vadd.f32 %v1052, %v1212
        %v1214 = vpop.f32.mrf.mxu0
        %v1215 = vpop.f32.mrf.mxu0
        %v1216 = vadd.f32 %v1055, %v1215
        %v1217 = vpop.f32.mrf.mxu0
        %1218 = vmatprep.mubr.bf16.mxu0 %v704
        %1219 = vmatmul.mubr.bf16.gmra.mxu0 %v703
        %v1220 = vpop.f32.mrf.mxu0
        %v1221 = vadd.f32 %v1060, %v1220
        %v1222 = vpop.f32.mrf.mxu0
        %v1223 = vpop.f32.mrf.mxu0
        %v1224 = vadd.f32 %v1063, %v1223
        %v1225 = vpop.f32.mrf.mxu0
        %1226 = vmatprep.mubr.bf16.mxu0 %v708
        %1227 = vmatmul.mubr.bf16.gmra.mxu0 %v707
        %v1228 = vpop.f32.mrf.mxu0
        %v1229 = vadd.f32 %v1068, %v1228
        %v1230 = vpop.f32.mrf.mxu0
        %v1231 = vpop.f32.mrf.mxu0
        %v1232 = vadd.f32 %v1071, %v1231
        %v1233 = vpop.f32.mrf.mxu0
        %1234 = vmatprep.mubr.bf16.mxu0 %v712
        %1235 = vmatmul.mubr.bf16.gmra.mxu0 %v711
        %v1236 = vpop.f32.mrf.mxu0
        %v1237 = vadd.f32 %v1076, %v1236
        %v1238 = vpop.f32.mrf.mxu0
        %v1239 = vpop.f32.mrf.mxu0
        %v1240 = vadd.f32 %v1079, %v1239
        %v1241 = vpop.f32.mrf.mxu0
        %1242 = vmatprep.mubr.bf16.mxu0 %v716
        %1243 = vmatmul.mubr.bf16.gmra.mxu0 %v715
        %v1244 = vpop.f32.mrf.mxu0
        %v1245 = vadd.f32 %v1084, %v1244
        %v1246 = vpop.f32.mrf.mxu0
        %v1247 = vpop.f32.mrf.mxu0
        %v1248 = vadd.f32 %v1087, %v1247
        %v1249 = vpop.f32.mrf.mxu0
        %1250 = vmatprep.mubr.bf16.mxu0 %v720
        %1251 = vmatmul.mubr.bf16.gmra.mxu0 %v719
        %v1252 = vpop.f32.mrf.mxu0
        %v1253 = vadd.f32 %v1092, %v1252
        %v1254 = vpop.f32.mrf.mxu0
        %v1255 = vpop.f32.mrf.mxu0
        %v1256 = vadd.f32 %v1095, %v1255
        %v1257 = vpop.f32.mrf.mxu0
        %1258 = vmatprep.mubr.bf16.mxu0 %v724
        %1259 = vmatmul.mubr.bf16.gmra.mxu0 %v723
        %v1260 = vpop.f32.mrf.mxu0
        %v1261 = vadd.f32 %v1100, %v1260
        %v1262 = vpop.f32.mrf.mxu0
        %v1263 = vpop.f32.mrf.mxu0
        %v1264 = vadd.f32 %v1103, %v1263
        %v1265 = vpop.f32.mrf.mxu0
        %1266 = vmatprep.mubr.bf16.mxu0 %v728
        %1267 = vmatmul.mubr.bf16.gmra.mxu0 %v727
        %v1268 = vpop.f32.mrf.mxu0
        %v1269 = vadd.f32 %v1108, %v1268
        %v1270 = vpop.f32.mrf.mxu0
        %v1271 = vpop.f32.mrf.mxu0
        %v1272 = vadd.f32 %v1111, %v1271
        %v1273 = vpop.f32.mrf.mxu0
        %1274 = vmatprep.mubr.bf16.mxu0 %v732
        %1275 = vmatmul.mubr.bf16.gmra.mxu0 %v731
        %v1276 = vpop.f32.mrf.mxu0
        %v1277 = vadd.f32 %v1116, %v1276
        %v1278 = vpop.f32.mrf.mxu0
        %v1279 = vpop.f32.mrf.mxu0
        %v1280 = vadd.f32 %v1119, %v1279
        %v1281 = vpop.f32.mrf.mxu0
        %1282 = vmatprep.mubr.bf16.mxu0 %v736
        %1283 = vmatmul.mubr.bf16.gmra.mxu0 %v735
        %v1284 = vpop.f32.mrf.mxu0
        %v1285 = vadd.f32 %v1124, %v1284
        %v1286 = vpop.f32.mrf.mxu0
        %v1287 = vpop.f32.mrf.mxu0
        %v1288 = vadd.f32 %v1127, %v1287
        %v1289 = vpop.f32.mrf.mxu0
        %1290 = vmatprep.mubr.bf16.mxu0 %v740
        %1291 = vmatmul.mubr.bf16.gmra.mxu0 %v739
        %v1292 = vpop.f32.mrf.mxu0
        %v1293 = vadd.f32 %v1132, %v1292
        %v1294 = vpop.f32.mrf.mxu0
        %v1295 = vpop.f32.mrf.mxu0
        %v1296 = vadd.f32 %v1135, %v1295
        %v1297 = vpop.f32.mrf.mxu0
        %1298 = vmatprep.mubr.bf16.mxu0 %v744
        %1299 = vmatmul.mubr.bf16.gmra.mxu0 %v743
        %v1300 = vpop.f32.mrf.mxu0
        %v1301 = vadd.f32 %v1140, %v1300
        %v1302 = vpop.f32.mrf.mxu0
        %v1303 = vpop.f32.mrf.mxu0
        %v1304 = vadd.f32 %v1143, %v1303
        %v1305 = vpop.f32.mrf.mxu0
        %1306 = vmatprep.mubr.bf16.mxu0 %v748
        %1307 = vmatmul.mubr.bf16.gmra.mxu0 %v747
        %v1308 = vpop.f32.mrf.mxu0
        %v1309 = vadd.f32 %v1148, %v1308
        %v1310 = vpop.f32.mrf.mxu0
        %v1311 = vpop.f32.mrf.mxu0
        %v1312 = vadd.f32 %v1151, %v1311
        %v1313 = vpop.f32.mrf.mxu0
        %1314 = vmatprep.mubr.bf16.mxu0 %v752
        %1315 = vmatmul.mubr.bf16.gmra.mxu0 %v751
        %v1316 = vpop.f32.mrf.mxu0
        %v1317 = vadd.f32 %v1156, %v1316
        %v1318 = vpop.f32.mrf.mxu0
        %v1319 = vpop.f32.mrf.mxu0
        %v1320 = vadd.f32 %v1159, %v1319
        %v1321 = vpop.f32.mrf.mxu0
        %1322 = vmatprep.mubr.bf16.mxu0 %v756
        %1323 = vmatmul.mubr.bf16.gmra.mxu0 %v755
        %v1324 = vpop.f32.mrf.mxu0
        %v1325 = vadd.f32 %v1164, %v1324
        %v1326 = vpop.f32.mrf.mxu0
        %v1327 = vpop.f32.mrf.mxu0
        %v1328 = vadd.f32 %v1167, %v1327
        %v1329 = vpop.f32.mrf.mxu0
        %1330 = vmatprep.mubr.bf16.mxu0 %v760
        %1331 = vmatmul.mubr.bf16.gmra.mxu0 %v759
        %v1332 = vpop.f32.mrf.mxu0
        %v1333 = vadd.f32 %v1172, %v1332
        %v1334 = vpop.f32.mrf.mxu0
        %v1335 = vpop.f32.mrf.mxu0
        %v1336 = vadd.f32 %v1175, %v1335
        %v1337 = vpop.f32.mrf.mxu0
        %1338 = vdwg.mxu0
        %v1339 = vadd.f32 %v409, %v1213
        %v1340 = vadd.f32 %v410, %v1216
        %v1341 = vadd.f32 %v411, %v1221
        %v1342 = vadd.f32 %v412, %v1224
        %v1343 = vadd.f32 %v413, %v1229
        %v1344 = vadd.f32 %v414, %v1232
        %v1345 = vadd.f32 %v415, %v1237
        %v1346 = vadd.f32 %v416, %v1240
        %v1347 = vadd.f32 %v417, %v1245
        %v1348 = vadd.f32 %v418, %v1248
        %v1349 = vadd.f32 %v419, %v1253
        %v1350 = vadd.f32 %v420, %v1256
        %v1351 = vadd.f32 %v421, %v1261
        %v1352 = vadd.f32 %v422, %v1264
        %v1353 = vadd.f32 %v423, %v1269
        %v1354 = vadd.f32 %v424, %v1272
        %v1355 = vadd.f32 %v425, %v1277
        %v1356 = vadd.f32 %v426, %v1280
        %v1357 = vadd.f32 %v427, %v1285
        %v1358 = vadd.f32 %v428, %v1288
        %v1359 = vadd.f32 %v429, %v1293
        %v1360 = vadd.f32 %v430, %v1296
        %v1361 = vadd.f32 %v431, %v1301
        %v1362 = vadd.f32 %v432, %v1304
        %v1363 = vadd.f32 %v433, %v1309
        %v1364 = vadd.f32 %v434, %v1312
        %v1365 = vadd.f32 %v435, %v1317
        %v1366 = vadd.f32 %v436, %v1320
        %v1367 = vadd.f32 %v437, %v1325
        %v1368 = vadd.f32 %v438, %v1328
        %v1369 = vadd.f32 %v439, %v1333
        %v1370 = vadd.f32 %v440, %v1336
        %1371 = vst [vmem:[#allocation2] sm:$0xff] %v1339
        %1372 = vst [vmem:[#allocation2 + $0x8] sm:$0xff] %v1340
        %1373 = vst [vmem:[#allocation2 + $0x10] sm:$0xff] %v1341
        %1374 = vst [vmem:[#allocation2 + $0x18] sm:$0xff] %v1342
        %1375 = vst [vmem:[#allocation2 + $0x20] sm:$0xff] %v1343
        %1376 = vst [vmem:[#allocation2 + $0x28] sm:$0xff] %v1344
        %1377 = vst [vmem:[#allocation2 + $0x30] sm:$0xff] %v1345
        %1378 = vst [vmem:[#allocation2 + $0x38] sm:$0xff] %v1346
        %1379 = vst [vmem:[#allocation2 + $0x40] sm:$0xff] %v1347
        %1380 = vst [vmem:[#allocation2 + $0x48] sm:$0xff] %v1348
        %1381 = vst [vmem:[#allocation2 + $0x50] sm:$0xff] %v1349
        %1382 = vst [vmem:[#allocation2 + $0x58] sm:$0xff] %v1350
        %1383 = vst [vmem:[#allocation2 + $0x60] sm:$0xff] %v1351
        %1384 = vst [vmem:[#allocation2 + $0x68] sm:$0xff] %v1352
        %1385 = vst [vmem:[#allocation2 + $0x70] sm:$0xff] %v1353
        %1386 = vst [vmem:[#allocation2 + $0x78] sm:$0xff] %v1354
        %1387 = vst [vmem:[#allocation2 + $0x80] sm:$0xff] %v1355
        %1388 = vst [vmem:[#allocation2 + $0x88] sm:$0xff] %v1356
        %1389 = vst [vmem:[#allocation2 + $0x90] sm:$0xff] %v1357
        %1390 = vst [vmem:[#allocation2 + $0x98] sm:$0xff] %v1358
        %1391 = vst [vmem:[#allocation2 + $0xa0] sm:$0xff] %v1359
        %1392 = vst [vmem:[#allocation2 + $0xa8] sm:$0xff] %v1360
        %1393 = vst [vmem:[#allocation2 + $0xb0] sm:$0xff] %v1361
        %1394 = vst [vmem:[#allocation2 + $0xb8] sm:$0xff] %v1362
        %1395 = vst [vmem:[#allocation2 + $0xc0] sm:$0xff] %v1363
        %1396 = vst [vmem:[#allocation2 + $0xc8] sm:$0xff] %v1364
        %1397 = vst [vmem:[#allocation2 + $0xd0] sm:$0xff] %v1365
        %1398 = vst [vmem:[#allocation2 + $0xd8] sm:$0xff] %v1366
        %1399 = vst [vmem:[#allocation2 + $0xe0] sm:$0xff] %v1367
        %1400 = vst [vmem:[#allocation2 + $0xe8] sm:$0xff] %v1368
        %1401 = vst [vmem:[#allocation2 + $0xf0] sm:$0xff] %v1369
        %1402 = vst [vmem:[#allocation2 + $0xf8] sm:$0xff] %v1370
        // Predicated region
        $region57: #{tpu_custom_call.1} parent=35 // pred_check
          %p1403 = pneg %p304
        $region58: #{tpu_custom_call.1} parent=35 // pred_check_branch
          %1405 = sbr.rel (%p1403) target = $region60
        $region59: #{tpu_custom_call.1} parent=35 // pred_region
          %v1406 = vld [vmem:[#allocation2] sm:$0xff]
          %v1407 = vld [vmem:[#allocation2 + $0x8] sm:$0xff]
          %v1408 = vld [vmem:[#allocation2 + $0x10] sm:$0xff]
          %v1409 = vld [vmem:[#allocation2 + $0x18] sm:$0xff]
          %v1410 = vld [vmem:[#allocation2 + $0x20] sm:$0xff]
          %v1411 = vld [vmem:[#allocation2 + $0x28] sm:$0xff]
          %v1412 = vld [vmem:[#allocation2 + $0x30] sm:$0xff]
          %v1413 = vld [vmem:[#allocation2 + $0x38] sm:$0xff]
          %v1414 = vld [vmem:[#allocation2 + $0x40] sm:$0xff]
          %v1415 = vld [vmem:[#allocation2 + $0x48] sm:$0xff]
          %v1416 = vld [vmem:[#allocation2 + $0x50] sm:$0xff]
          %v1417 = vld [vmem:[#allocation2 + $0x58] sm:$0xff]
          %v1418 = vld [vmem:[#allocation2 + $0x60] sm:$0xff]
          %v1419 = vld [vmem:[#allocation2 + $0x68] sm:$0xff]
          %v1420 = vld [vmem:[#allocation2 + $0x70] sm:$0xff]
          %v1421 = vld [vmem:[#allocation2 + $0x78] sm:$0xff]
          %v1422 = vld [vmem:[#allocation2 + $0x80] sm:$0xff]
          %v1423 = vld [vmem:[#allocation2 + $0x88] sm:$0xff]
          %v1424 = vld [vmem:[#allocation2 + $0x90] sm:$0xff]
          %v1425 = vld [vmem:[#allocation2 + $0x98] sm:$0xff]
          %v1426 = vld [vmem:[#allocation2 + $0xa0] sm:$0xff]
          %v1427 = vld [vmem:[#allocation2 + $0xa8] sm:$0xff]
          %v1428 = vld [vmem:[#allocation2 + $0xb0] sm:$0xff]
          %v1429 = vld [vmem:[#allocation2 + $0xb8] sm:$0xff]
          %v1430 = vld [vmem:[#allocation2 + $0xc0] sm:$0xff]
          %v1431 = vld [vmem:[#allocation2 + $0xc8] sm:$0xff]
          %v1432 = vld [vmem:[#allocation2 + $0xd0] sm:$0xff]
          %v1433 = vld [vmem:[#allocation2 + $0xd8] sm:$0xff]
          %v1434 = vld [vmem:[#allocation2 + $0xe0] sm:$0xff]
          %v1435 = vld [vmem:[#allocation2 + $0xe8] sm:$0xff]
          %v1436 = vld [vmem:[#allocation2 + $0xf0] sm:$0xff]
          %v1437 = vld [vmem:[#allocation2 + $0xf8] sm:$0xff]
          %v1438 = vmul.f32 %v1406, 0.9
          %v1439 = vmul.f32 %v1407, 0.9
          %v1440 = vmul.f32 %v1408, 0.9
          %v1441 = vmul.f32 %v1409, 0.9
          %v1442 = vmul.f32 %v1410, 0.9
          %v1443 = vmul.f32 %v1411, 0.9
          %v1444 = vmul.f32 %v1412, 0.9
          %v1445 = vmul.f32 %v1413, 0.9
          %v1446 = vmul.f32 %v1414, 0.9
          %v1447 = vmul.f32 %v1415, 0.9
          %v1448 = vmul.f32 %v1416, 0.9
          %v1449 = vmul.f32 %v1417, 0.9
          %v1450 = vmul.f32 %v1418, 0.9
          %v1451 = vmul.f32 %v1419, 0.9
          %v1452 = vmul.f32 %v1420, 0.9
          %v1453 = vmul.f32 %v1421, 0.9
          %v1454 = vmul.f32 %v1422, 0.9
          %v1455 = vmul.f32 %v1423, 0.9
          %v1456 = vmul.f32 %v1424, 0.9
          %v1457 = vmul.f32 %v1425, 0.9
          %v1458 = vmul.f32 %v1426, 0.9
          %v1459 = vmul.f32 %v1427, 0.9
          %v1460 = vmul.f32 %v1428, 0.9
          %v1461 = vmul.f32 %v1429, 0.9
          %v1462 = vmul.f32 %v1430, 0.9
          %v1463 = vmul.f32 %v1431, 0.9
          %v1464 = vmul.f32 %v1432, 0.9
          %v1465 = vmul.f32 %v1433, 0.9
          %v1466 = vmul.f32 %v1434, 0.9
          %v1467 = vmul.f32 %v1435, 0.9
          %v1468 = vmul.f32 %v1436, 0.9
          %v1469 = vmul.f32 %v1437, 0.9
          %v1470 = vld [vmem:[%s265] sm:$0xff]
          %v1471 = vld [vmem:[%s265 + $0x8] sm:$0xff]
          %v1472 = vld [vmem:[%s265 + $0x10] sm:$0xff]
          %v1473 = vld [vmem:[%s265 + $0x18] sm:$0xff]
          %v1474 = vld [vmem:[%s265 + $0x20] sm:$0xff]
          %v1475 = vld [vmem:[%s265 + $0x28] sm:$0xff]
          %v1476 = vld [vmem:[%s265 + $0x30] sm:$0xff]
          %v1477 = vld [vmem:[%s265 + $0x38] sm:$0xff]
          %v1478 = vld [vmem:[%s265 + $0x40] sm:$0xff]
          %v1479 = vld [vmem:[%s265 + $0x48] sm:$0xff]
          %v1480 = vld [vmem:[%s265 + $0x50] sm:$0xff]
          %v1481 = vld [vmem:[%s265 + $0x58] sm:$0xff]
          %v1482 = vld [vmem:[%s265 + $0x60] sm:$0xff]
          %v1483 = vld [vmem:[%s265 + $0x68] sm:$0xff]
          %v1484 = vld [vmem:[%s265 + $0x70] sm:$0xff]
          %v1485 = vld [vmem:[%s265 + $0x78] sm:$0xff]
          %v1486 = vld [vmem:[%s265 + $0x80] sm:$0xff]
          %v1487 = vld [vmem:[%s265 + $0x88] sm:$0xff]
          %v1488 = vld [vmem:[%s265 + $0x90] sm:$0xff]
          %v1489 = vld [vmem:[%s265 + $0x98] sm:$0xff]
          %v1490 = vld [vmem:[%s265 + $0xa0] sm:$0xff]
          %v1491 = vld [vmem:[%s265 + $0xa8] sm:$0xff]
          %v1492 = vld [vmem:[%s265 + $0xb0] sm:$0xff]
          %v1493 = vld [vmem:[%s265 + $0xb8] sm:$0xff]
          %v1494 = vld [vmem:[%s265 + $0xc0] sm:$0xff]
          %v1495 = vld [vmem:[%s265 + $0xc8] sm:$0xff]
          %v1496 = vld [vmem:[%s265 + $0xd0] sm:$0xff]
          %v1497 = vld [vmem:[%s265 + $0xd8] sm:$0xff]
          %v1498 = vld [vmem:[%s265 + $0xe0] sm:$0xff]
          %v1499 = vld [vmem:[%s265 + $0xe8] sm:$0xff]
          %v1500 = vld [vmem:[%s265 + $0xf0] sm:$0xff]
          %v1501 = vld [vmem:[%s265 + $0xf8] sm:$0xff]
          %v1502 = vmul.f32 %v1470, 0.1
          %v1503 = vmul.f32 %v1471, 0.1
          %v1504 = vmul.f32 %v1472, 0.1
          %v1505 = vmul.f32 %v1473, 0.1
          %v1506 = vmul.f32 %v1474, 0.1
          %v1507 = vmul.f32 %v1475, 0.1
          %v1508 = vmul.f32 %v1476, 0.1
          %v1509 = vmul.f32 %v1477, 0.1
          %v1510 = vmul.f32 %v1478, 0.1
          %v1511 = vmul.f32 %v1479, 0.1
          %v1512 = vmul.f32 %v1480, 0.1
          %v1513 = vmul.f32 %v1481, 0.1
          %v1514 = vmul.f32 %v1482, 0.1
          %v1515 = vmul.f32 %v1483, 0.1
          %v1516 = vmul.f32 %v1484, 0.1
          %v1517 = vmul.f32 %v1485, 0.1
          %v1518 = vmul.f32 %v1486, 0.1
          %v1519 = vmul.f32 %v1487, 0.1
          %v1520 = vmul.f32 %v1488, 0.1
          %v1521 = vmul.f32 %v1489, 0.1
          %v1522 = vmul.f32 %v1490, 0.1
          %v1523 = vmul.f32 %v1491, 0.1
          %v1524 = vmul.f32 %v1492, 0.1
          %v1525 = vmul.f32 %v1493, 0.1
          %v1526 = vmul.f32 %v1494, 0.1
          %v1527 = vmul.f32 %v1495, 0.1
          %v1528 = vmul.f32 %v1496, 0.1
          %v1529 = vmul.f32 %v1497, 0.1
          %v1530 = vmul.f32 %v1498, 0.1
          %v1531 = vmul.f32 %v1499, 0.1
          %v1532 = vmul.f32 %v1500, 0.1
          %v1533 = vmul.f32 %v1501, 0.1
          %v1534 = vadd.f32 %v1438, %v1502
          %v1535 = vadd.f32 %v1439, %v1503
          %v1536 = vadd.f32 %v1440, %v1504
          %v1537 = vadd.f32 %v1441, %v1505
          %v1538 = vadd.f32 %v1442, %v1506
          %v1539 = vadd.f32 %v1443, %v1507
          %v1540 = vadd.f32 %v1444, %v1508
          %v1541 = vadd.f32 %v1445, %v1509
          %v1542 = vadd.f32 %v1446, %v1510
          %v1543 = vadd.f32 %v1447, %v1511
          %v1544 = vadd.f32 %v1448, %v1512
          %v1545 = vadd.f32 %v1449, %v1513
          %v1546 = vadd.f32 %v1450, %v1514
          %v1547 = vadd.f32 %v1451, %v1515
          %v1548 = vadd.f32 %v1452, %v1516
          %v1549 = vadd.f32 %v1453, %v1517
          %v1550 = vadd.f32 %v1454, %v1518
          %v1551 = vadd.f32 %v1455, %v1519
          %v1552 = vadd.f32 %v1456, %v1520
          %v1553 = vadd.f32 %v1457, %v1521
          %v1554 = vadd.f32 %v1458, %v1522
          %v1555 = vadd.f32 %v1459, %v1523
          %v1556 = vadd.f32 %v1460, %v1524
          %v1557 = vadd.f32 %v1461, %v1525
          %v1558 = vadd.f32 %v1462, %v1526
          %v1559 = vadd.f32 %v1463, %v1527
          %v1560 = vadd.f32 %v1464, %v1528
          %v1561 = vadd.f32 %v1465, %v1529
          %v1562 = vadd.f32 %v1466, %v1530
          %v1563 = vadd.f32 %v1467, %v1531
          %v1564 = vadd.f32 %v1468, %v1532
          %v1565 = vadd.f32 %v1469, %v1533
          %v1566 = vld [vmem:[#allocation9] sm:$0xff]
          %v1567 = vld [vmem:[#allocation9 + $0x8] sm:$0xff]
          %v1568 = vld [vmem:[#allocation9 + $0x10] sm:$0xff]
          %v1569 = vld [vmem:[#allocation9 + $0x18] sm:$0xff]
          %v1570 = vld [vmem:[#allocation9 + $0x20] sm:$0xff]
          %v1571 = vld [vmem:[#allocation9 + $0x28] sm:$0xff]
          %v1572 = vld [vmem:[#allocation9 + $0x30] sm:$0xff]
          %v1573 = vld [vmem:[#allocation9 + $0x38] sm:$0xff]
          %v1574 = vld [vmem:[#allocation9 + $0x40] sm:$0xff]
          %v1575 = vld [vmem:[#allocation9 + $0x48] sm:$0xff]
          %v1576 = vld [vmem:[#allocation9 + $0x50] sm:$0xff]
          %v1577 = vld [vmem:[#allocation9 + $0x58] sm:$0xff]
          %v1578 = vld [vmem:[#allocation9 + $0x60] sm:$0xff]
          %v1579 = vld [vmem:[#allocation9 + $0x68] sm:$0xff]
          %v1580 = vld [vmem:[#allocation9 + $0x70] sm:$0xff]
          %v1581 = vld [vmem:[#allocation9 + $0x78] sm:$0xff]
          %1582 = vmatprep.subr.mxu0 0.0
          %1583 = vmatpush1.msra.mxu0 %v1581
          %1584 = vmatprep.subr.mxu0 0.0
          %1585 = vmatpush1.msra.mxu0 %v1580
          %1586 = vmatprep.subr.mxu0 0.0
          %1587 = vmatpush1.msra.mxu0 %v1579
          %1588 = vmatprep.subr.mxu0 0.0
          %1589 = vmatpush1.msra.mxu0 %v1578
          %1590 = vmatprep.subr.mxu0 0.0
          %1591 = vmatpush1.msra.mxu0 %v1577
          %1592 = vmatprep.subr.mxu0 0.0
          %1593 = vmatpush1.msra.mxu0 %v1576
          %1594 = vmatprep.subr.mxu0 0.0
          %1595 = vmatpush1.msra.mxu0 %v1575
          %1596 = vmatprep.subr.mxu0 0.0
          %1597 = vmatpush1.msra.mxu0 %v1574
          %1598 = vmatprep.subr.mxu0 0.0
          %1599 = vmatpush1.msra.mxu0 %v1573
          %1600 = vmatprep.subr.mxu0 0.0
          %1601 = vmatpush1.msra.mxu0 %v1572
          %1602 = vmatprep.subr.mxu0 0.0
          %1603 = vmatpush1.msra.mxu0 %v1571
          %1604 = vmatprep.subr.mxu0 0.0
          %1605 = vmatpush1.msra.mxu0 %v1570
          %1606 = vmatprep.subr.mxu0 0.0
          %1607 = vmatpush1.msra.mxu0 %v1569
          %1608 = vmatprep.subr.mxu0 0.0
          %1609 = vmatpush1.msra.mxu0 %v1568
          %1610 = vmatprep.subr.mxu0 0.0
          %1611 = vmatpush1.msra.mxu0 %v1567
          %1612 = vmatprep.subr.mxu0 0.0
          %1613 = vmatpush1.msra.mxu0 %v1566
          %1614 = vmatprep.subr.mxu0 0.0
          %1615 = vmatpush2.msra.mxu0 0.0
          %1616 = vmatprep.subr.mxu0 0.0
          %1617 = vmatpush2.msra.mxu0 0.0
          %1618 = vmatprep.subr.mxu0 0.0
          %1619 = vmatpush2.msra.mxu0 0.0
          %1620 = vmatprep.subr.mxu0 0.0
          %1621 = vmatpush2.msra.mxu0 0.0
          %1622 = vmatprep.subr.mxu0 0.0
          %1623 = vmatpush2.msra.mxu0 0.0
          %1624 = vmatprep.subr.mxu0 0.0
          %1625 = vmatpush2.msra.mxu0 0.0
          %1626 = vmatprep.subr.mxu0 0.0
          %1627 = vmatpush2.msra.mxu0 0.0
          %1628 = vmatprep.subr.mxu0 0.0
          %1629 = vmatpush2.msra.mxu0 0.0
          %1630 = vmatprep.subr.mxu0 0.0
          %1631 = vmatpush2.msra.mxu0 0.0
          %1632 = vmatprep.subr.mxu0 0.0
          %1633 = vmatpush2.msra.mxu0 0.0
          %1634 = vmatprep.subr.mxu0 0.0
          %1635 = vmatpush2.msra.mxu0 0.0
          %1636 = vmatprep.subr.mxu0 0.0
          %1637 = vmatpush2.msra.mxu0 0.0
          %1638 = vmatprep.subr.mxu0 0.0
          %1639 = vmatpush2.msra.mxu0 0.0
          %1640 = vmatprep.subr.mxu0 0.0
          %1641 = vmatpush2.msra.mxu0 0.0
          %1642 = vmatprep.subr.mxu0 0.0
          %1643 = vmatpush2.msra.mxu0 0.0
          %1644 = vmatprep.subr.mxu0 0.0
          %1645 = vmatpush2.msra.mxu0 0.0
          %1646 = vmatprep.mubr.f32.mxu0 0.0
          %1647 = vmatmul.mubr.f32.gmra.mxu0 %v1534
          %v1648 = vpop.f32.mrf.mxu0
          %v1649 = vadd.f32 0.0, %v1648
          %v1650 = vpop.f32.mrf.mxu0
          %1651 = vmatprep.mubr.f32.mxu0 0.0
          %1652 = vmatmul.mubr.f32.gmra.mxu0 %v1535
          %v1653 = vpop.f32.mrf.mxu0
          %v1654 = vadd.f32 0.0, %v1653
          %v1655 = vpop.f32.mrf.mxu0
          %1656 = vmatprep.mubr.f32.mxu0 0.0
          %1657 = vmatmul.mubr.f32.gmra.mxu0 %v1536
          %v1658 = vpop.f32.mrf.mxu0
          %v1659 = vadd.f32 0.0, %v1658
          %v1660 = vpop.f32.mrf.mxu0
          %1661 = vmatprep.mubr.f32.mxu0 0.0
          %1662 = vmatmul.mubr.f32.gmra.mxu0 %v1537
          %v1663 = vpop.f32.mrf.mxu0
          %v1664 = vadd.f32 0.0, %v1663
          %v1665 = vpop.f32.mrf.mxu0
          %1666 = vmatprep.mubr.f32.mxu0 0.0
          %1667 = vmatmul.mubr.f32.gmra.mxu0 %v1538
          %v1668 = vpop.f32.mrf.mxu0
          %v1669 = vadd.f32 0.0, %v1668
          %v1670 = vpop.f32.mrf.mxu0
          %1671 = vmatprep.mubr.f32.mxu0 0.0
          %1672 = vmatmul.mubr.f32.gmra.mxu0 %v1539
          %v1673 = vpop.f32.mrf.mxu0
          %v1674 = vadd.f32 0.0, %v1673
          %v1675 = vpop.f32.mrf.mxu0
          %1676 = vmatprep.mubr.f32.mxu0 0.0
          %1677 = vmatmul.mubr.f32.gmra.mxu0 %v1540
          %v1678 = vpop.f32.mrf.mxu0
          %v1679 = vadd.f32 0.0, %v1678
          %v1680 = vpop.f32.mrf.mxu0
          %1681 = vmatprep.mubr.f32.mxu0 0.0
          %1682 = vmatmul.mubr.f32.gmra.mxu0 %v1541
          %v1683 = vpop.f32.mrf.mxu0
          %v1684 = vadd.f32 0.0, %v1683
          %v1685 = vpop.f32.mrf.mxu0
          %1686 = vmatprep.mubr.f32.mxu0 0.0
          %1687 = vmatmul.mubr.f32.gmra.mxu0 %v1542
          %v1688 = vpop.f32.mrf.mxu0
          %v1689 = vadd.f32 0.0, %v1688
          %v1690 = vpop.f32.mrf.mxu0
          %1691 = vmatprep.mubr.f32.mxu0 0.0
          %1692 = vmatmul.mubr.f32.gmra.mxu0 %v1543
          %v1693 = vpop.f32.mrf.mxu0
          %v1694 = vadd.f32 0.0, %v1693
          %v1695 = vpop.f32.mrf.mxu0
          %1696 = vmatprep.mubr.f32.mxu0 0.0
          %1697 = vmatmul.mubr.f32.gmra.mxu0 %v1544
          %v1698 = vpop.f32.mrf.mxu0
          %v1699 = vadd.f32 0.0, %v1698
          %v1700 = vpop.f32.mrf.mxu0
          %1701 = vmatprep.mubr.f32.mxu0 0.0
          %1702 = vmatmul.mubr.f32.gmra.mxu0 %v1545
          %v1703 = vpop.f32.mrf.mxu0
          %v1704 = vadd.f32 0.0, %v1703
          %v1705 = vpop.f32.mrf.mxu0
          %1706 = vmatprep.mubr.f32.mxu0 0.0
          %1707 = vmatmul.mubr.f32.gmra.mxu0 %v1546
          %v1708 = vpop.f32.mrf.mxu0
          %v1709 = vadd.f32 0.0, %v1708
          %v1710 = vpop.f32.mrf.mxu0
          %1711 = vmatprep.mubr.f32.mxu0 0.0
          %1712 = vmatmul.mubr.f32.gmra.mxu0 %v1547
          %v1713 = vpop.f32.mrf.mxu0
          %v1714 = vadd.f32 0.0, %v1713
          %v1715 = vpop.f32.mrf.mxu0
          %1716 = vmatprep.mubr.f32.mxu0 0.0
          %1717 = vmatmul.mubr.f32.gmra.mxu0 %v1548
          %v1718 = vpop.f32.mrf.mxu0
          %v1719 = vadd.f32 0.0, %v1718
          %v1720 = vpop.f32.mrf.mxu0
          %1721 = vmatprep.mubr.f32.mxu0 0.0
          %1722 = vmatmul.mubr.f32.gmra.mxu0 %v1549
          %v1723 = vpop.f32.mrf.mxu0
          %v1724 = vadd.f32 0.0, %v1723
          %v1725 = vpop.f32.mrf.mxu0
          %1726 = vmatprep.mubr.f32.mxu0 0.0
          %1727 = vmatmul.mubr.f32.gmra.mxu0 %v1550
          %v1728 = vpop.f32.mrf.mxu0
          %v1729 = vadd.f32 0.0, %v1728
          %v1730 = vpop.f32.mrf.mxu0
          %1731 = vmatprep.mubr.f32.mxu0 0.0
          %1732 = vmatmul.mubr.f32.gmra.mxu0 %v1551
          %v1733 = vpop.f32.mrf.mxu0
          %v1734 = vadd.f32 0.0, %v1733
          %v1735 = vpop.f32.mrf.mxu0
          %1736 = vmatprep.mubr.f32.mxu0 0.0
          %1737 = vmatmul.mubr.f32.gmra.mxu0 %v1552
          %v1738 = vpop.f32.mrf.mxu0
          %v1739 = vadd.f32 0.0, %v1738
          %v1740 = vpop.f32.mrf.mxu0
          %1741 = vmatprep.mubr.f32.mxu0 0.0
          %1742 = vmatmul.mubr.f32.gmra.mxu0 %v1553
          %v1743 = vpop.f32.mrf.mxu0
          %v1744 = vadd.f32 0.0, %v1743
          %v1745 = vpop.f32.mrf.mxu0
          %1746 = vmatprep.mubr.f32.mxu0 0.0
          %1747 = vmatmul.mubr.f32.gmra.mxu0 %v1554
          %v1748 = vpop.f32.mrf.mxu0
          %v1749 = vadd.f32 0.0, %v1748
          %v1750 = vpop.f32.mrf.mxu0
          %1751 = vmatprep.mubr.f32.mxu0 0.0
          %1752 = vmatmul.mubr.f32.gmra.mxu0 %v1555
          %v1753 = vpop.f32.mrf.mxu0
          %v1754 = vadd.f32 0.0, %v1753
          %v1755 = vpop.f32.mrf.mxu0
          %1756 = vmatprep.mubr.f32.mxu0 0.0
          %1757 = vmatmul.mubr.f32.gmra.mxu0 %v1556
          %v1758 = vpop.f32.mrf.mxu0
          %v1759 = vadd.f32 0.0, %v1758
          %v1760 = vpop.f32.mrf.mxu0
          %1761 = vmatprep.mubr.f32.mxu0 0.0
          %1762 = vmatmul.mubr.f32.gmra.mxu0 %v1557
          %v1763 = vpop.f32.mrf.mxu0
          %v1764 = vadd.f32 0.0, %v1763
          %v1765 = vpop.f32.mrf.mxu0
          %1766 = vmatprep.mubr.f32.mxu0 0.0
          %1767 = vmatmul.mubr.f32.gmra.mxu0 %v1558
          %v1768 = vpop.f32.mrf.mxu0
          %v1769 = vadd.f32 0.0, %v1768
          %v1770 = vpop.f32.mrf.mxu0
          %1771 = vmatprep.mubr.f32.mxu0 0.0
          %1772 = vmatmul.mubr.f32.gmra.mxu0 %v1559
          %v1773 = vpop.f32.mrf.mxu0
          %v1774 = vadd.f32 0.0, %v1773
          %v1775 = vpop.f32.mrf.mxu0
          %1776 = vmatprep.mubr.f32.mxu0 0.0
          %1777 = vmatmul.mubr.f32.gmra.mxu0 %v1560
          %v1778 = vpop.f32.mrf.mxu0
          %v1779 = vadd.f32 0.0, %v1778
          %v1780 = vpop.f32.mrf.mxu0
          %1781 = vmatprep.mubr.f32.mxu0 0.0
          %1782 = vmatmul.mubr.f32.gmra.mxu0 %v1561
          %v1783 = vpop.f32.mrf.mxu0
          %v1784 = vadd.f32 0.0, %v1783
          %v1785 = vpop.f32.mrf.mxu0
          %1786 = vmatprep.mubr.f32.mxu0 0.0
          %1787 = vmatmul.mubr.f32.gmra.mxu0 %v1562
          %v1788 = vpop.f32.mrf.mxu0
          %v1789 = vadd.f32 0.0, %v1788
          %v1790 = vpop.f32.mrf.mxu0
          %1791 = vmatprep.mubr.f32.mxu0 0.0
          %1792 = vmatmul.mubr.f32.gmra.mxu0 %v1563
          %v1793 = vpop.f32.mrf.mxu0
          %v1794 = vadd.f32 0.0, %v1793
          %v1795 = vpop.f32.mrf.mxu0
          %1796 = vmatprep.mubr.f32.mxu0 0.0
          %1797 = vmatmul.mubr.f32.gmra.mxu0 %v1564
          %v1798 = vpop.f32.mrf.mxu0
          %v1799 = vadd.f32 0.0, %v1798
          %v1800 = vpop.f32.mrf.mxu0
          %1801 = vmatprep.mubr.f32.mxu0 0.0
          %1802 = vmatmul.mubr.f32.gmra.mxu0 %v1565
          %v1803 = vpop.f32.mrf.mxu0
          %v1804 = vadd.f32 0.0, %v1803
          %v1805 = vpop.f32.mrf.mxu0
          %1806 = vdwg.mxu0
          %v1807 = vmul.f32 %v1649, 0.4054651
          %v1808 = vmul.f32 %v1654, 0.4054651
          %v1809 = vmul.f32 %v1659, 0.4054651
          %v1810 = vmul.f32 %v1664, 0.4054651
          %v1811 = vmul.f32 %v1669, 0.4054651
          %v1812 = vmul.f32 %v1674, 0.4054651
          %v1813 = vmul.f32 %v1679, 0.4054651
          %v1814 = vmul.f32 %v1684, 0.4054651
          %v1815 = vmul.f32 %v1689, 0.4054651
          %v1816 = vmul.f32 %v1694, 0.4054651
          %v1817 = vmul.f32 %v1699, 0.4054651
          %v1818 = vmul.f32 %v1704, 0.4054651
          %v1819 = vmul.f32 %v1709, 0.4054651
          %v1820 = vmul.f32 %v1714, 0.4054651
          %v1821 = vmul.f32 %v1719, 0.4054651
          %v1822 = vmul.f32 %v1724, 0.4054651
          %v1823 = vmul.f32 %v1729, 0.4054651
          %v1824 = vmul.f32 %v1734, 0.4054651
          %v1825 = vmul.f32 %v1739, 0.4054651
          %v1826 = vmul.f32 %v1744, 0.4054651
          %v1827 = vmul.f32 %v1749, 0.4054651
          %v1828 = vmul.f32 %v1754, 0.4054651
          %v1829 = vmul.f32 %v1759, 0.4054651
          %v1830 = vmul.f32 %v1764, 0.4054651
          %v1831 = vmul.f32 %v1769, 0.4054651
          %v1832 = vmul.f32 %v1774, 0.4054651
          %v1833 = vmul.f32 %v1779, 0.4054651
          %v1834 = vmul.f32 %v1784, 0.4054651
          %v1835 = vmul.f32 %v1789, 0.4054651
          %v1836 = vmul.f32 %v1794, 0.4054651
          %v1837 = vmul.f32 %v1799, 0.4054651
          %v1838 = vmul.f32 %v1804, 0.4054651
          %v1839 = vmul.f32 %v1534, 0.5945349
          %v1840 = vmul.f32 %v1535, 0.5945349
          %v1841 = vmul.f32 %v1536, 0.5945349
          %v1842 = vmul.f32 %v1537, 0.5945349
          %v1843 = vmul.f32 %v1538, 0.5945349
          %v1844 = vmul.f32 %v1539, 0.5945349
          %v1845 = vmul.f32 %v1540, 0.5945349
          %v1846 = vmul.f32 %v1541, 0.5945349
          %v1847 = vmul.f32 %v1542, 0.5945349
          %v1848 = vmul.f32 %v1543, 0.5945349
          %v1849 = vmul.f32 %v1544, 0.5945349
          %v1850 = vmul.f32 %v1545, 0.5945349
          %v1851 = vmul.f32 %v1546, 0.5945349
          %v1852 = vmul.f32 %v1547, 0.5945349
          %v1853 = vmul.f32 %v1548, 0.5945349
          %v1854 = vmul.f32 %v1549, 0.5945349
          %v1855 = vmul.f32 %v1550, 0.5945349
          %v1856 = vmul.f32 %v1551, 0.5945349
          %v1857 = vmul.f32 %v1552, 0.5945349
          %v1858 = vmul.f32 %v1553, 0.5945349
          %v1859 = vmul.f32 %v1554, 0.5945349
          %v1860 = vmul.f32 %v1555, 0.5945349
          %v1861 = vmul.f32 %v1556, 0.5945349
          %v1862 = vmul.f32 %v1557, 0.5945349
          %v1863 = vmul.f32 %v1558, 0.5945349
          %v1864 = vmul.f32 %v1559, 0.5945349
          %v1865 = vmul.f32 %v1560, 0.5945349
          %v1866 = vmul.f32 %v1561, 0.5945349
          %v1867 = vmul.f32 %v1562, 0.5945349
          %v1868 = vmul.f32 %v1563, 0.5945349
          %v1869 = vmul.f32 %v1564, 0.5945349
          %v1870 = vmul.f32 %v1565, 0.5945349
          %v1871 = vadd.f32 %v1807, %v1839
          %v1872 = vadd.f32 %v1808, %v1840
          %v1873 = vadd.f32 %v1809, %v1841
          %v1874 = vadd.f32 %v1810, %v1842
          %v1875 = vadd.f32 %v1811, %v1843
          %v1876 = vadd.f32 %v1812, %v1844
          %v1877 = vadd.f32 %v1813, %v1845
          %v1878 = vadd.f32 %v1814, %v1846
          %v1879 = vadd.f32 %v1815, %v1847
          %v1880 = vadd.f32 %v1816, %v1848
          %v1881 = vadd.f32 %v1817, %v1849
          %v1882 = vadd.f32 %v1818, %v1850
          %v1883 = vadd.f32 %v1819, %v1851
          %v1884 = vadd.f32 %v1820, %v1852
          %v1885 = vadd.f32 %v1821, %v1853
          %v1886 = vadd.f32 %v1822, %v1854
          %v1887 = vadd.f32 %v1823, %v1855
          %v1888 = vadd.f32 %v1824, %v1856
          %v1889 = vadd.f32 %v1825, %v1857
          %v1890 = vadd.f32 %v1826, %v1858
          %v1891 = vadd.f32 %v1827, %v1859
          %v1892 = vadd.f32 %v1828, %v1860
          %v1893 = vadd.f32 %v1829, %v1861
          %v1894 = vadd.f32 %v1830, %v1862
          %v1895 = vadd.f32 %v1831, %v1863
          %v1896 = vadd.f32 %v1832, %v1864
          %v1897 = vadd.f32 %v1833, %v1865
          %v1898 = vadd.f32 %v1834, %v1866
          %v1899 = vadd.f32 %v1835, %v1867
          %v1900 = vadd.f32 %v1836, %v1868
          %v1901 = vadd.f32 %v1837, %v1869
          %v1902 = vadd.f32 %v1838, %v1870
          %1903 = vst [vmem:[%s298] sm:$0xff] %v1871
          %1904 = vst [vmem:[%s298 + $0x8] sm:$0xff] %v1872
          %1905 = vst [vmem:[%s298 + $0x10] sm:$0xff] %v1873
          %1906 = vst [vmem:[%s298 + $0x18] sm:$0xff] %v1874
          %1907 = vst [vmem:[%s298 + $0x20] sm:$0xff] %v1875
          %1908 = vst [vmem:[%s298 + $0x28] sm:$0xff] %v1876
          %1909 = vst [vmem:[%s298 + $0x30] sm:$0xff] %v1877
          %1910 = vst [vmem:[%s298 + $0x38] sm:$0xff] %v1878
          %1911 = vst [vmem:[%s298 + $0x40] sm:$0xff] %v1879
          %1912 = vst [vmem:[%s298 + $0x48] sm:$0xff] %v1880
          %1913 = vst [vmem:[%s298 + $0x50] sm:$0xff] %v1881
          %1914 = vst [vmem:[%s298 + $0x58] sm:$0xff] %v1882
          %1915 = vst [vmem:[%s298 + $0x60] sm:$0xff] %v1883
          %1916 = vst [vmem:[%s298 + $0x68] sm:$0xff] %v1884
          %1917 = vst [vmem:[%s298 + $0x70] sm:$0xff] %v1885
          %1918 = vst [vmem:[%s298 + $0x78] sm:$0xff] %v1886
          %1919 = vst [vmem:[%s298 + $0x80] sm:$0xff] %v1887
          %1920 = vst [vmem:[%s298 + $0x88] sm:$0xff] %v1888
          %1921 = vst [vmem:[%s298 + $0x90] sm:$0xff] %v1889
          %1922 = vst [vmem:[%s298 + $0x98] sm:$0xff] %v1890
          %1923 = vst [vmem:[%s298 + $0xa0] sm:$0xff] %v1891
          %1924 = vst [vmem:[%s298 + $0xa8] sm:$0xff] %v1892
          %1925 = vst [vmem:[%s298 + $0xb0] sm:$0xff] %v1893
          %1926 = vst [vmem:[%s298 + $0xb8] sm:$0xff] %v1894
          %1927 = vst [vmem:[%s298 + $0xc0] sm:$0xff] %v1895
          %1928 = vst [vmem:[%s298 + $0xc8] sm:$0xff] %v1896
          %1929 = vst [vmem:[%s298 + $0xd0] sm:$0xff] %v1897
          %1930 = vst [vmem:[%s298 + $0xd8] sm:$0xff] %v1898
          %1931 = vst [vmem:[%s298 + $0xe0] sm:$0xff] %v1899
          %1932 = vst [vmem:[%s298 + $0xe8] sm:$0xff] %v1900
          %1933 = vst [vmem:[%s298 + $0xf0] sm:$0xff] %v1901
          %1934 = vst [vmem:[%s298 + $0xf8] sm:$0xff] %v1902
        $region60: #{tpu_custom_call.1} parent=35 // pred_fallthru
          _
        %s1935 = sand.u32 %s138, 1
        %s1936 = scalar_lea.sflag [#allocation5], %s1935
        %s1937 = sand.u32 %s138, 1
        %s1938 = smul.addr %s1937, 256
        %s1939 = scalar_lea.vmem [#allocation10], %s1938
        // Predicated region
        $region61: #{tpu_custom_call.1} parent=35 // pred_check
          %p1940 = pneg %p148
        $region62: #{tpu_custom_call.1} parent=35 // pred_check_branch
          %1942 = sbr.rel (%p1940) target = $region64
        $region63: #{tpu_custom_call.1} parent=35 // pred_region
          %s1943 = smul.u32 32, %s26
          %s1945 = ssub.s32 4096, 4096
          %1946 = vsyncadd %s1936, %s1945
          %s1947 = smul.addr %s1943, 128
          %s1948 = scalar_lea.hbm %s4, %s1947
          %s1949 = sshll.u32 %s1939, 4
          %s1950 = int_to_ptr.vmem [resolvable:$true] %s1949
          %1955 = dma.vmem_to_hbm [thread:$0]  %s1950, 4096, %s1948, %s1936, 128, 128, 8
        $region64: #{tpu_custom_call.1} parent=35 // pred_fallthru
          _
      $region36: #{tpu_custom_call.1} parent=5 // pred_fallthru
        _
      %p1956 = scmp.le.s32.totalorder 2, %s17
      // Predicated region
      $region65: #{tpu_custom_call.1} parent=5 // pred_check
        %p1957 = pneg %p1956
      $region66: #{tpu_custom_call.1} parent=5 // pred_check_branch
        %1959 = sbr.rel (%p1957) target = $region68
      $region67: #{tpu_custom_call.1} parent=5 // pred_region
        %s1960 = ssub.s32 %s17, 2
        // Predicated region
        $region69: #{tpu_custom_call.1} parent=67 // pred_check
          %p1961 = pneg %p154
        $region70: #{tpu_custom_call.1} parent=67 // pred_check_branch
          %1963 = sbr.rel (%p1961) target = $region72
        $region71: #{tpu_custom_call.1} parent=67 // pred_region
          %s1964 = sand.u32 %s139, 1
          %s1965 = scalar_lea.sflag [#allocation5], %s1964
          %s1966 = sand.u32 %s139, 1
          %s1967 = smul.addr %s1966, 256
          %s1968 = scalar_lea.vmem [#allocation10], %s1967
          %1969 = dma.done %s1965, 4096
        $region72: #{tpu_custom_call.1} parent=67 // pred_fallthru
          _
      $region68: #{tpu_custom_call.1} parent=5 // pred_fallthru
        _
    $region6: #{tpu_custom_call.1} parent=1 // loop_footer
      %s21 = sadd.s32 1, %s17
    $region7: #{tpu_custom_call.1} parent=1 // loop_footer_branch
      %16 = sbr.rel target = $region3
    $region8: #{tpu_custom_call.1} parent=1 // loop_exit
      _
    %1970 = vsyncpa [#allocation4], 1
    %s1971 = scalar_lea.sflag [#allocation4], 1
    %1972 = vsyncpa %s1971, 1
    %1973 = vsyncpa [#allocation7], 1
    %1974 = vsyncpa [#allocation5], 1
    %s1975 = scalar_lea.sflag [#allocation5], 1
    %1976 = vsyncpa %s1975, 1

</llo_original>
